<compile_context>
chip_gen: v7x
topology: tpu7x:2x2x1
jax: 0.10.0
libtpu: 0.0.40
codegen_flags: <defaults>
</compile_context>

<pallas_src>
import jax
import jax.numpy as jnp
import numpy as np
from jax.experimental import pallas as pl
from jax.experimental.pallas import tpu as pltpu


D_IN = 512      # input / f1 hidden dim
D_H1 = 512      # regression first layer out
D_H2 = 256      # regression second layer out
D_OUT = 2       # fused [dist, rot] heads


def goal_mlp_kernel(x1_ref, x2_ref,
                    wf1_ref, bf1_ref,
                    wr1_ref, br1_ref,
                    wr2_ref, br2_ref,
                    whead_ref, bhead_ref,
                    out_ref):
    wf1 = wf1_ref[...]
    bf1 = bf1_ref[...]

    # Shared f1 layer: two matmuls against the same resident weight.  Avoids a
    # concatenate + slice round-trip (extra VMEM copies) for identical FLOPs.
    h1 = jnp.dot(x1_ref[...].astype(jnp.bfloat16), wf1,
                 preferred_element_type=jnp.float32)
    h1 = jnp.maximum(h1 + bf1, 0.0)                    # f32 epilogue
    h2 = jnp.dot(x2_ref[...].astype(jnp.bfloat16), wf1,
                 preferred_element_type=jnp.float32)
    h2 = jnp.maximum(h2 + bf1, 0.0)

    d = h1 - h2                                        # (tb, 512), f32

    # regression: Linear(512,512)+ReLU -> Linear(512,256)+ReLU
    r = jnp.dot(d.astype(jnp.bfloat16), wr1_ref[...],
                preferred_element_type=jnp.float32)
    r = jnp.maximum(r + br1_ref[...], 0.0)
    r = jnp.dot(r.astype(jnp.bfloat16), wr2_ref[...],
                preferred_element_type=jnp.float32)
    r = jnp.maximum(r + br2_ref[...], 0.0)

    # Dropout(0.5): identity in eval/inference mode.
    # TODO(synk): training-mode dropout (stochastic mask via pltpu.prng_*) not implemented.

    # fused heads: (tb,256) @ (256,2) -> (tb,2) == [dist | rot]
    out = jnp.dot(r.astype(jnp.bfloat16), whead_ref[...],
                  preferred_element_type=jnp.float32)
    out_ref[...] = out + bhead_ref[...]


def _round_up(x, m):
    return ((x + m - 1) // m) * m


def _tpu_generation():
    try:
        kind = jax.devices()[0].device_kind.lower()
    except Exception:
        return "unknown"
    if "7" in kind:
        return "v7x"
    if "v6" in kind or "6e" in kind:
        return "v6e"
    if "v5" in kind or "5e" in kind:
        return "v5e"
    return "unknown"


def _tiling_config(batch):
    """Generation-aware (tile_b cap, vmem_limit_bytes, grid splits, input buffers)."""
    gen = _tpu_generation()
    if gen == "v7x":
        # 64 MiB VMEM/TC -> leave headroom; >=2 grid steps so both TCs work.
        tile_cap, vmem_limit, grid_splits, buffers = 1024, 48 * 1024 * 1024, 2, 2
    elif gen == "v6e":
        # Mildly DMA-exposed on inputs -> 3-deep buffering; 128 MiB VMEM.
        tile_cap, vmem_limit, grid_splits, buffers = 2048, 64 * 1024 * 1024, 1, 3
    elif gen == "v5e":
        # MXU-bound; big tiles amortize per-step overhead, default buffering.
        tile_cap, vmem_limit, grid_splits, buffers = 2048, 64 * 1024 * 1024, 1, 2
    else:
        # Conservative defaults that fit every generation.
        tile_cap, vmem_limit, grid_splits, buffers = 1024, 48 * 1024 * 1024, 2, 2

    if batch <= 8:
        tb = batch                                  # block == full array dim
    else:
        tb = min(tile_cap, _round_up(pl.cdiv(batch, grid_splits), 8))
        tb = min(tb, _round_up(batch, 8))
    return tb, vmem_limit, buffers


def _batch_spec(tb, cols, buffers):
    idx = lambda i: (i, 0)
    if buffers and buffers > 2:
        try:
            return pl.BlockSpec((tb, cols), idx, pipeline_mode=pl.Buffered(buffers))
        except TypeError:
            pass  # older jax without pipeline_mode kwarg -> default 2-deep
    return pl.BlockSpec((tb, cols), idx)


def goal_mlp_forward(x1, x2, params, tile_b=None):
    """x1, x2: (B, 512) in f32 or bf16 (bf16 halves input HBM traffic)."""
    B = x1.shape[0]
    tb_auto, vmem_limit, buffers = _tiling_config(B)
    tb = min(tile_b, B) if tile_b is not None else tb_auto
    grid = (pl.cdiv(B, tb),)

    def resident(arr):
        # Same block index every grid step -> loaded once, stays in VMEM.
        return pl.BlockSpec(arr.shape, lambda i: (0, 0))

    wf1, bf1 = params["wf1"], params["bf1"]
    wr1, br1 = params["wr1"], params["br1"]
    wr2, br2 = params["wr2"], params["br2"]
    whead, bhead = params["whead"], params["bhead"]

    out = pl.pallas_call(
        goal_mlp_kernel,
        out_shape=jax.ShapeDtypeStruct((B, D_OUT), jnp.float32),
        grid=grid,
        in_specs=[
            _batch_spec(tb, D_IN, buffers), _batch_spec(tb, D_IN, buffers),
            resident(wf1), resident(bf1),
            resident(wr1), resident(br1),
            resident(wr2), resident(br2),
            resident(whead), resident(bhead),
        ],
        out_specs=pl.BlockSpec((tb, D_OUT), lambda i: (i, 0)),
        compiler_params=pltpu.CompilerParams(
            dimension_semantics=("parallel",),      # shards grid over v7x's 2 TCs
            vmem_limit_bytes=vmem_limit,
        ),
    )(x1, x2, wf1, bf1, wr1, br1, wr2, br2, whead, bhead)

    dist_output = out[:, 0:1]
    rot_output = out[:, 1:2]
    return dist_output, rot_output


def init_params(key):
    """Deterministic parameter init (xavier-uniform-like weights in bf16, biases
    in f32; head biases zero per module.initialize())."""
    ks = jax.random.split(key, 6)

    def xavier(k, fan_in, fan_out):
        limit = np.sqrt(6.0 / (fan_in + fan_out))
        # stored as (in, out) so the kernel can do x @ W; bf16 halves HBM bytes
        return jax.random.uniform(k, (fan_in, fan_out), jnp.float32,
                                  minval=-limit, maxval=limit).astype(jnp.bfloat16)

    def linear_bias(k, fan_in, fan_out):
        bound = 1.0 / np.sqrt(fan_in)
        return jax.random.uniform(k, (1, fan_out), jnp.float32,
                                  minval=-bound, maxval=bound)

    params = {
        "wf1": xavier(ks[0], D_IN, D_IN),
        "bf1": linear_bias(ks[1], D_IN, D_IN),
        "wr1": xavier(ks[2], D_IN, D_H1),
        "br1": linear_bias(ks[3], D_IN, D_H1),
        "wr2": xavier(ks[4], D_H1, D_H2),
        "br2": linear_bias(ks[5], D_H1, D_H2),
        # heads: xavier_uniform weights, zero biases (per module.initialize())
        "whead": jnp.concatenate(
            [xavier(jax.random.fold_in(key, 100), D_H2, 1),
             xavier(jax.random.fold_in(key, 101), D_H2, 1)], axis=1),
        "bhead": jnp.zeros((1, D_OUT), jnp.float32),
    }
    return params


def reference_forward(x1, x2, p):
    """Pure-JAX reference matching the kernel's bf16-matmul / f32-epilogue math."""
    dot = lambda a, b: jnp.dot(a.astype(jnp.bfloat16), b,
                               preferred_element_type=jnp.float32)
    relu = lambda v: jnp.maximum(v, 0.0)
    h1 = relu(dot(x1, p["wf1"]) + p["bf1"])
    h2 = relu(dot(x2, p["wf1"]) + p["bf1"])
    r = relu(dot(h1 - h2, p["wr1"]) + p["br1"])
    r = relu(dot(r, p["wr2"]) + p["br2"])
    out = dot(r, p["whead"]) + p["bhead"]
    return out[:, 0:1], out[:, 1:2]


if __name__ == "__main__":
    key = jax.random.PRNGKey(0)
    kx1, kx2, kp = jax.random.split(key, 3)

    B = 16           # small batch
    x1 = jax.random.normal(kx1, (B, D_IN), jnp.float32)
    x2 = jax.random.normal(kx2, (B, D_IN), jnp.float32)
    params = init_params(kp)
    ref_dist, ref_rot = reference_forward(x1, x2, params)

    # 1) explicit small tile to exercise a multi-step grid
    dist_out, rot_out = goal_mlp_forward(x1, x2, params, tile_b=8)
    jax.block_until_ready((dist_out, rot_out))
    np.testing.assert_allclose(np.asarray(dist_out), np.asarray(ref_dist),
                               rtol=1e-2, atol=1e-2)
    np.testing.assert_allclose(np.asarray(rot_out), np.asarray(ref_rot),
                               rtol=1e-2, atol=1e-2)

    # 2) generation-aware default tiling path
    dist_out2, rot_out2 = goal_mlp_forward(x1, x2, params)
    jax.block_until_ready((dist_out2, rot_out2))
    np.testing.assert_allclose(np.asarray(dist_out2), np.asarray(ref_dist),
                               rtol=1e-2, atol=1e-2)
    np.testing.assert_allclose(np.asarray(rot_out2), np.asarray(ref_rot),
                               rtol=1e-2, atol=1e-2)

    assert dist_out.shape == (B, 1) and rot_out.shape == (B, 1)
    print("KERNEL_OK")
</pallas_src>

<mosaic_0001>
module attributes {stable_mosaic.version = 11 : i64} {
  func.func @goal_mlp_kernel(%arg0: i32, %arg1: memref<8x512xf32, #tpu.memory_space<vmem>>, %arg2: memref<8x512xf32, #tpu.memory_space<vmem>>, %arg3: memref<512x512xbf16, #tpu.memory_space<vmem>>, %arg4: memref<1x512xf32, #tpu.memory_space<vmem>>, %arg5: memref<512x512xbf16, #tpu.memory_space<vmem>>, %arg6: memref<1x512xf32, #tpu.memory_space<vmem>>, %arg7: memref<512x256xbf16, #tpu.memory_space<vmem>>, %arg8: memref<1x256xf32, #tpu.memory_space<vmem>>, %arg9: memref<256x2xbf16, #tpu.memory_space<vmem>>, %arg10: memref<1x2xf32, #tpu.memory_space<vmem>>, %arg11: memref<8x2xf32, #tpu.memory_space<vmem>>) attributes {dimension_semantics = [#tpu.dimension_semantics<parallel>], iteration_bounds = array<i64: 2>, scalar_prefetch = 0 : i64, scratch_operands = 0 : i64, tpu.core_type = #tpu.core_type<tc>, window_params = [{transform_indices = @transform_0, window_bounds = array<i64: 8, 512>}, {transform_indices = @transform_1, window_bounds = array<i64: 8, 512>}, {pipeline_mode = #tpu.pipeline_mode<synchronous>, transform_indices = @transform_2, window_bounds = array<i64: 512, 512>}, {pipeline_mode = #tpu.pipeline_mode<synchronous>, transform_indices = @transform_3, window_bounds = array<i64: 1, 512>}, {pipeline_mode = #tpu.pipeline_mode<synchronous>, transform_indices = @transform_4, window_bounds = array<i64: 512, 512>}, {pipeline_mode = #tpu.pipeline_mode<synchronous>, transform_indices = @transform_5, window_bounds = array<i64: 1, 512>}, {pipeline_mode = #tpu.pipeline_mode<synchronous>, transform_indices = @transform_6, window_bounds = array<i64: 512, 256>}, {pipeline_mode = #tpu.pipeline_mode<synchronous>, transform_indices = @transform_7, window_bounds = array<i64: 1, 256>}, {pipeline_mode = #tpu.pipeline_mode<synchronous>, transform_indices = @transform_8, window_bounds = array<i64: 256, 2>}, {pipeline_mode = #tpu.pipeline_mode<synchronous>, transform_indices = @transform_9, window_bounds = array<i64: 1, 2>}, {transform_indices = @transform_10, window_bounds = array<i64: 8, 2>}]} {
    %c0 = arith.constant 0 : index
    %c0_0 = arith.constant 0 : index
    %0 = vector.load %arg3[%c0, %c0_0] : memref<512x512xbf16, #tpu.memory_space<vmem>>, vector<512x512xbf16>
    %c0_1 = arith.constant 0 : index
    %c0_2 = arith.constant 0 : index
    %1 = vector.load %arg4[%c0_1, %c0_2] : memref<1x512xf32, #tpu.memory_space<vmem>>, vector<1x512xf32>
    %c0_3 = arith.constant 0 : index
    %c0_4 = arith.constant 0 : index
    %2 = vector.load %arg1[%c0_3, %c0_4] : memref<8x512xf32, #tpu.memory_space<vmem>>, vector<8x512xf32>
    %3 = arith.truncf %2 : vector<8x512xf32> to vector<8x512xbf16>
    %cst = arith.constant dense<0.000000e+00> : vector<8x512xf32>
    %4 = tpu.matmul %3, %0, %cst {dimension_numbers = #tpu.dot_dimension_numbers<[1], [0], [0], [1], [0, 0, 1, 1], [], []>} : vector<8x512xbf16>, vector<512x512xbf16>, vector<8x512xf32> -> vector<8x512xf32>
    %5 = vector.broadcast %1 : vector<1x512xf32> to vector<8x512xf32>
    %6 = arith.addf %4, %5 : vector<8x512xf32>
    %cst_5 = arith.constant 0.000000e+00 : f32
    %7 = vector.broadcast %cst_5 : f32 to vector<8x512xf32>
    %8 = arith.maximumf %6, %7 : vector<8x512xf32>
    %c0_6 = arith.constant 0 : index
    %c0_7 = arith.constant 0 : index
    %9 = vector.load %arg2[%c0_6, %c0_7] : memref<8x512xf32, #tpu.memory_space<vmem>>, vector<8x512xf32>
    %10 = arith.truncf %9 : vector<8x512xf32> to vector<8x512xbf16>
    %cst_8 = arith.constant dense<0.000000e+00> : vector<8x512xf32>
    %11 = tpu.matmul %10, %0, %cst_8 {dimension_numbers = #tpu.dot_dimension_numbers<[1], [0], [0], [1], [0, 0, 1, 1], [], []>} : vector<8x512xbf16>, vector<512x512xbf16>, vector<8x512xf32> -> vector<8x512xf32>
    %12 = vector.broadcast %1 : vector<1x512xf32> to vector<8x512xf32>
    %13 = arith.addf %11, %12 : vector<8x512xf32>
    %cst_9 = arith.constant 0.000000e+00 : f32
    %14 = vector.broadcast %cst_9 : f32 to vector<8x512xf32>
    %15 = arith.maximumf %13, %14 : vector<8x512xf32>
    %16 = arith.subf %8, %15 : vector<8x512xf32>
    %17 = arith.truncf %16 : vector<8x512xf32> to vector<8x512xbf16>
    %c0_10 = arith.constant 0 : index
    %c0_11 = arith.constant 0 : index
    %18 = vector.load %arg5[%c0_10, %c0_11] : memref<512x512xbf16, #tpu.memory_space<vmem>>, vector<512x512xbf16>
    %cst_12 = arith.constant dense<0.000000e+00> : vector<8x512xf32>
    %19 = tpu.matmul %17, %18, %cst_12 {dimension_numbers = #tpu.dot_dimension_numbers<[1], [0], [0], [1], [0, 0, 1, 1], [], []>} : vector<8x512xbf16>, vector<512x512xbf16>, vector<8x512xf32> -> vector<8x512xf32>
    %c0_13 = arith.constant 0 : index
    %c0_14 = arith.constant 0 : index
    %20 = vector.load %arg6[%c0_13, %c0_14] : memref<1x512xf32, #tpu.memory_space<vmem>>, vector<1x512xf32>
    %21 = vector.broadcast %20 : vector<1x512xf32> to vector<8x512xf32>
    %22 = arith.addf %19, %21 : vector<8x512xf32>
    %cst_15 = arith.constant 0.000000e+00 : f32
    %23 = vector.broadcast %cst_15 : f32 to vector<8x512xf32>
    %24 = arith.maximumf %22, %23 : vector<8x512xf32>
    %25 = arith.truncf %24 : vector<8x512xf32> to vector<8x512xbf16>
    %c0_16 = arith.constant 0 : index
    %c0_17 = arith.constant 0 : index
    %26 = vector.load %arg7[%c0_16, %c0_17] : memref<512x256xbf16, #tpu.memory_space<vmem>>, vector<512x256xbf16>
    %cst_18 = arith.constant dense<0.000000e+00> : vector<8x256xf32>
    %27 = tpu.matmul %25, %26, %cst_18 {dimension_numbers = #tpu.dot_dimension_numbers<[1], [0], [0], [1], [0, 0, 1, 1], [], []>} : vector<8x512xbf16>, vector<512x256xbf16>, vector<8x256xf32> -> vector<8x256xf32>
    %c0_19 = arith.constant 0 : index
    %c0_20 = arith.constant 0 : index
    %28 = vector.load %arg8[%c0_19, %c0_20] : memref<1x256xf32, #tpu.memory_space<vmem>>, vector<1x256xf32>
    %29 = vector.broadcast %28 : vector<1x256xf32> to vector<8x256xf32>
    %30 = arith.addf %27, %29 : vector<8x256xf32>
    %cst_21 = arith.constant 0.000000e+00 : f32
    %31 = vector.broadcast %cst_21 : f32 to vector<8x256xf32>
    %32 = arith.maximumf %30, %31 : vector<8x256xf32>
    %33 = arith.truncf %32 : vector<8x256xf32> to vector<8x256xbf16>
    %c0_22 = arith.constant 0 : index
    %c0_23 = arith.constant 0 : index
    %34 = vector.load %arg9[%c0_22, %c0_23] : memref<256x2xbf16, #tpu.memory_space<vmem>>, vector<256x2xbf16>
    %cst_24 = arith.constant dense<0.000000e+00> : vector<8x2xf32>
    %35 = tpu.matmul %33, %34, %cst_24 {dimension_numbers = #tpu.dot_dimension_numbers<[1], [0], [0], [1], [0, 0, 1, 1], [], []>} : vector<8x256xbf16>, vector<256x2xbf16>, vector<8x2xf32> -> vector<8x2xf32>
    %c0_25 = arith.constant 0 : index
    %c0_26 = arith.constant 0 : index
    %36 = vector.load %arg10[%c0_25, %c0_26] : memref<1x2xf32, #tpu.memory_space<vmem>>, vector<1x2xf32>
    %37 = vector.broadcast %36 : vector<1x2xf32> to vector<8x2xf32>
    %38 = arith.addf %35, %37 : vector<8x2xf32>
    %c0_27 = arith.constant 0 : index
    %c0_28 = arith.constant 0 : index
    %39 = vector.load %arg11[%c0_27, %c0_28] : memref<8x2xf32, #tpu.memory_space<vmem>>, vector<8x2xf32>
    tpu.vector_store %arg11[%c0_27, %c0_28], %38 {strides = array<i32>} : memref<8x2xf32, #tpu.memory_space<vmem>>, vector<8x2xf32>,
    return
  }
  func.func @transform_0(%arg0: i32) -> (i32, i32) {
    %c0_i32 = arith.constant 0 : i32
    %c0_i32_0 = arith.constant 0 : i32
    return %arg0, %c0_i32 : i32, i32
  }
  func.func @transform_1(%arg0: i32) -> (i32, i32) {
    %c0_i32 = arith.constant 0 : i32
    %c0_i32_0 = arith.constant 0 : i32
    return %arg0, %c0_i32 : i32, i32
  }
  func.func @transform_2(%arg0: i32) -> (i32, i32) {
    %c0_i32 = arith.constant 0 : i32
    %c0_i32_0 = arith.constant 0 : i32
    %c0_i32_1 = arith.constant 0 : i32
    return %c0_i32, %c0_i32_0 : i32, i32
  }
  func.func @transform_3(%arg0: i32) -> (i32, i32) {
    %c0_i32 = arith.constant 0 : i32
    %c0_i32_0 = arith.constant 0 : i32
    %c0_i32_1 = arith.constant 0 : i32
    return %c0_i32, %c0_i32_0 : i32, i32
  }
  func.func @transform_4(%arg0: i32) -> (i32, i32) {
    %c0_i32 = arith.constant 0 : i32
    %c0_i32_0 = arith.constant 0 : i32
    %c0_i32_1 = arith.constant 0 : i32
    return %c0_i32, %c0_i32_0 : i32, i32
  }
  func.func @transform_5(%arg0: i32) -> (i32, i32) {
    %c0_i32 = arith.constant 0 : i32
    %c0_i32_0 = arith.constant 0 : i32
    %c0_i32_1 = arith.constant 0 : i32
    return %c0_i32, %c0_i32_0 : i32, i32
  }
  func.func @transform_6(%arg0: i32) -> (i32, i32) {
    %c0_i32 = arith.constant 0 : i32
    %c0_i32_0 = arith.constant 0 : i32
    %c0_i32_1 = arith.constant 0 : i32
    return %c0_i32, %c0_i32_0 : i32, i32
  }
  func.func @transform_7(%arg0: i32) -> (i32, i32) {
    %c0_i32 = arith.constant 0 : i32
    %c0_i32_0 = arith.constant 0 : i32
    %c0_i32_1 = arith.constant 0 : i32
    return %c0_i32, %c0_i32_0 : i32, i32
  }
  func.func @transform_8(%arg0: i32) -> (i32, i32) {
    %c0_i32 = arith.constant 0 : i32
    %c0_i32_0 = arith.constant 0 : i32
    %c0_i32_1 = arith.constant 0 : i32
    return %c0_i32, %c0_i32_0 : i32, i32
  }
  func.func @transform_9(%arg0: i32) -> (i32, i32) {
    %c0_i32 = arith.constant 0 : i32
    %c0_i32_0 = arith.constant 0 : i32
    %c0_i32_1 = arith.constant 0 : i32
    return %c0_i32, %c0_i32_0 : i32, i32
  }
  func.func @transform_10(%arg0: i32) -> (i32, i32) {
    %c0_i32 = arith.constant 0 : i32
    %c0_i32_0 = arith.constant 0 : i32
    return %arg0, %c0_i32 : i32, i32
  }
}

</mosaic_0001>

<llo_original>
// kernel: tpu_custom_call.1
$region0: #{tpu_custom_call.1}
  #allocation0 [shape = 'u32[]', space=smem, size = 0x4, offset = 0x4, fixed_abs, tag = 'smem constant byte address 0x4 - core index']
  #allocation1 [shape = 'u32[144,128]{1,0:T(1,128)}', space=vmem, size = 0x12000, scoped, tag = 'internal scratch']
  %s0 = inlined_call_operand.vmem [shape: f32[16,512], index: 0, kind: input, shape index: {}]
  %s1 = inlined_call_operand.vmem [shape: f32[16,512], index: 1, kind: input, shape index: {}]
  %s2 = inlined_call_operand.hbm [shape: bf16[512,512], index: 2, kind: input, shape index: {}]
  %s3 = inlined_call_operand.vmem [shape: f32[1,512], index: 3, kind: input, shape index: {}]
  %s4 = inlined_call_operand.hbm [shape: bf16[512,512], index: 4, kind: input, shape index: {}]
  %s5 = inlined_call_operand.vmem [shape: f32[1,512], index: 5, kind: input, shape index: {}]
  %s6 = inlined_call_operand.hbm [shape: bf16[512,256], index: 6, kind: input, shape index: {}]
  %s7 = inlined_call_operand.vmem [shape: f32[1,256], index: 7, kind: input, shape index: {}]
  %s8 = inlined_call_operand.vmem [shape: bf16[256,2], index: 8, kind: input, shape index: {}]
  %s9 = inlined_call_operand.vmem [shape: f32[1,2], index: 9, kind: input, shape index: {}]
  %s10 = inlined_call_operand.vmem [shape: f32[16,2], index: 10, kind: output, shape index: {}]
  %s11 = sld [smem:[#allocation0]]
  $region85: #{tpu_custom_call.1} parent=0
    _
  %s13 = ssub.s32 1, %s11
  %s14 = scalar_select 0, %s13, %s11
  $region1: #{tpu_custom_call.1} parent=0
    #allocation2 [shape = 'u8[524288]{0}', space=vmem, size = 0x80000, scoped, tag = 'input window, operand 2, single buffered']
    #allocation3 [shape = 's32[2]{0}', space=sflag, size = 0x8, scoped, tag = 'scoped memory for tpu_custom_call.1']
    #allocation4 [shape = 'u8[524288]{0}', space=vmem, size = 0x80000, scoped, tag = 'input window, operand 4, single buffered']
    #allocation5 [shape = 's32[1]{0}', space=sflag, size = 0x4, scoped, tag = 'scoped memory for tpu_custom_call.1']
    #allocation6 [shape = 'u8[262144]{0}', space=vmem, size = 0x40000, scoped, tag = 'input window, operand 6, single buffered']
    %15 = vsyncpa [#allocation3], 0
    %16 = vsyncpa [#allocation5], 0
    loop: start=0, step=1, limit=4
    $region2: #{tpu_custom_call.1} parent=1 // loop_pre_header
      _
    $region3: #{tpu_custom_call.1} parent=1 // loop_header
      %s18 = sphi 0, %s22
      %p19 = scmp.ge.s32.totalorder %s18, 4
      %s28 = sphi 0, %s30
      %s31 = sphi 0, %s28
      %s32 = sphi 0, %s31
      %s48 = sphi 0, %s32
      %s54 = sphi 0, %s56
      %s57 = sphi 0, %s54
      %s58 = sphi 0, %s57
      %s74 = sphi 0, %s58
      %s78 = sphi 0, %s78
      %s80 = sphi 0, %s78
      %s81 = sphi 0, %s80
      %s95 = sphi 0, %s81
      %s99 = sphi 0, %s99
      %s101 = sphi 0, %s99
      %s102 = sphi 0, %s101
      %s116 = sphi 0, %s102
      %s120 = sphi 0, %s120
      %s122 = sphi 0, %s120
      %s123 = sphi 0, %s122
      %s137 = sphi 0, %s123
      %s141 = sphi 0, %s141
      %s143 = sphi 0, %s141
      %s144 = sphi 0, %s143
      %s158 = sphi 0, %s144
      %s162 = sphi 0, %s162
      %s164 = sphi 0, %s162
      %s165 = sphi 0, %s164
      %s179 = sphi 0, %s165
      %s183 = sphi 0, %s183
      %s185 = sphi 0, %s183
      %s186 = sphi 0, %s185
      %s200 = sphi 0, %s186
      %s204 = sphi 0, %s204
      %s206 = sphi 0, %s204
      %s207 = sphi 0, %s206
      %s221 = sphi 0, %s207
      %s225 = sphi 0, %s225
      %s227 = sphi 0, %s225
      %s228 = sphi 0, %s227
      %s242 = sphi 0, %s228
      %s248 = sphi 0, %s250
      %s251 = sphi 0, %s248
      %s252 = sphi 0, %s251
      %s268 = sphi 0, %s252
    $region4: #{tpu_custom_call.1} parent=1 // loop_header_branch
      %21 = sbr.rel (%p19) target = $region8
    $region5: #{tpu_custom_call.1} parent=1 // loop_body
      %s23 = ssub.s32 %s18, 1
      %s24 = ssub.s32 %s18, 2
      %s25 = sadd.s32 %s18, 1
      %s26 = ssub.s32 %s18, %s25
      %p27 = scmp.eq.s32.totalorder %s26, 0
      %s29 = sadd.s32 %s28, 1
      %s30 = scalar_select %p27, %s28, %s29
      %p33 = pneg %p27
      %p34 = scmp.eq.s32.totalorder %s18, 1
      %p35 = por %p33, %p34
      %p36 = scmp.ne.s32.totalorder %s28, %s31
      %p37 = scmp.eq.s32.totalorder %s18, 0
      %p38 = por %p36, %p37
      %p39 = scmp.ne.s32.totalorder %s28, %s31
      %p40 = scmp.eq.s32.totalorder %s23, 1
      %p41 = por %p39, %p40
      %p42 = scmp.ne.s32.totalorder %s31, %s32
      %p43 = scmp.eq.s32.totalorder %s23, 0
      %p44 = por %p42, %p43
      %p45 = scmp.ne.s32.totalorder %s31, %s32
      %p46 = scmp.eq.s32.totalorder %s24, 1
      %p47 = por %p45, %p46
      %p49 = scmp.ne.s32.totalorder %s32, %s48
      %p50 = scmp.eq.s32.totalorder %s24, 0
      %p51 = por %p49, %p50
      %s52 = ssub.s32 %s18, %s25
      %p53 = scmp.eq.s32.totalorder %s52, 0
      %s55 = sadd.s32 %s54, 1
      %s56 = scalar_select %p53, %s54, %s55
      %p59 = pneg %p53
      %p60 = scmp.eq.s32.totalorder %s18, 1
      %p61 = por %p59, %p60
      %p62 = scmp.ne.s32.totalorder %s54, %s57
      %p63 = scmp.eq.s32.totalorder %s18, 0
      %p64 = por %p62, %p63
      %p65 = scmp.ne.s32.totalorder %s54, %s57
      %p66 = scmp.eq.s32.totalorder %s23, 1
      %p67 = por %p65, %p66
      %p68 = scmp.ne.s32.totalorder %s57, %s58
      %p69 = scmp.eq.s32.totalorder %s23, 0
      %p70 = por %p68, %p69
      %p71 = scmp.ne.s32.totalorder %s57, %s58
      %p72 = scmp.eq.s32.totalorder %s24, 1
      %p73 = por %p71, %p72
      %p75 = scmp.ne.s32.totalorder %s58, %s74
      %p76 = scmp.eq.s32.totalorder %s24, 0
      %p77 = por %p75, %p76
      %s79 = sadd.s32 %s78, 1
      %p82 = scmp.eq.s32.totalorder %s18, 1
      %p83 = scmp.ne.s32.totalorder %s78, %s80
      %p84 = scmp.eq.s32.totalorder %s18, 0
      %p85 = por %p83, %p84
      %p86 = scmp.ne.s32.totalorder %s78, %s80
      %p87 = scmp.eq.s32.totalorder %s23, 1
      %p88 = por %p86, %p87
      %p89 = scmp.ne.s32.totalorder %s80, %s81
      %p90 = scmp.eq.s32.totalorder %s23, 0
      %p91 = por %p89, %p90
      %p92 = scmp.ne.s32.totalorder %s80, %s81
      %p93 = scmp.eq.s32.totalorder %s24, 1
      %p94 = por %p92, %p93
      %p96 = scmp.ne.s32.totalorder %s81, %s95
      %p97 = scmp.eq.s32.totalorder %s24, 0
      %p98 = por %p96, %p97
      %s100 = sadd.s32 %s99, 1
      %p103 = scmp.eq.s32.totalorder %s18, 1
      %p104 = scmp.ne.s32.totalorder %s99, %s101
      %p105 = scmp.eq.s32.totalorder %s18, 0
      %p106 = por %p104, %p105
      %p107 = scmp.ne.s32.totalorder %s99, %s101
      %p108 = scmp.eq.s32.totalorder %s23, 1
      %p109 = por %p107, %p108
      %p110 = scmp.ne.s32.totalorder %s101, %s102
      %p111 = scmp.eq.s32.totalorder %s23, 0
      %p112 = por %p110, %p111
      %p113 = scmp.ne.s32.totalorder %s101, %s102
      %p114 = scmp.eq.s32.totalorder %s24, 1
      %p115 = por %p113, %p114
      %p117 = scmp.ne.s32.totalorder %s102, %s116
      %p118 = scmp.eq.s32.totalorder %s24, 0
      %p119 = por %p117, %p118
      %s121 = sadd.s32 %s120, 1
      %p124 = scmp.eq.s32.totalorder %s18, 1
      %p125 = scmp.ne.s32.totalorder %s120, %s122
      %p126 = scmp.eq.s32.totalorder %s18, 0
      %p127 = por %p125, %p126
      %p128 = scmp.ne.s32.totalorder %s120, %s122
      %p129 = scmp.eq.s32.totalorder %s23, 1
      %p130 = por %p128, %p129
      %p131 = scmp.ne.s32.totalorder %s122, %s123
      %p132 = scmp.eq.s32.totalorder %s23, 0
      %p133 = por %p131, %p132
      %p134 = scmp.ne.s32.totalorder %s122, %s123
      %p135 = scmp.eq.s32.totalorder %s24, 1
      %p136 = por %p134, %p135
      %p138 = scmp.ne.s32.totalorder %s123, %s137
      %p139 = scmp.eq.s32.totalorder %s24, 0
      %p140 = por %p138, %p139
      %s142 = sadd.s32 %s141, 1
      %p145 = scmp.eq.s32.totalorder %s18, 1
      %p146 = scmp.ne.s32.totalorder %s141, %s143
      %p147 = scmp.eq.s32.totalorder %s18, 0
      %p148 = por %p146, %p147
      %p149 = scmp.ne.s32.totalorder %s141, %s143
      %p150 = scmp.eq.s32.totalorder %s23, 1
      %p151 = por %p149, %p150
      %p152 = scmp.ne.s32.totalorder %s143, %s144
      %p153 = scmp.eq.s32.totalorder %s23, 0
      %p154 = por %p152, %p153
      %p155 = scmp.ne.s32.totalorder %s143, %s144
      %p156 = scmp.eq.s32.totalorder %s24, 1
      %p157 = por %p155, %p156
      %p159 = scmp.ne.s32.totalorder %s144, %s158
      %p160 = scmp.eq.s32.totalorder %s24, 0
      %p161 = por %p159, %p160
      %s163 = sadd.s32 %s162, 1
      %p166 = scmp.eq.s32.totalorder %s18, 1
      %p167 = scmp.ne.s32.totalorder %s162, %s164
      %p168 = scmp.eq.s32.totalorder %s18, 0
      %p169 = por %p167, %p168
      %p170 = scmp.ne.s32.totalorder %s162, %s164
      %p171 = scmp.eq.s32.totalorder %s23, 1
      %p172 = por %p170, %p171
      %p173 = scmp.ne.s32.totalorder %s164, %s165
      %p174 = scmp.eq.s32.totalorder %s23, 0
      %p175 = por %p173, %p174
      %p176 = scmp.ne.s32.totalorder %s164, %s165
      %p177 = scmp.eq.s32.totalorder %s24, 1
      %p178 = por %p176, %p177
      %p180 = scmp.ne.s32.totalorder %s165, %s179
      %p181 = scmp.eq.s32.totalorder %s24, 0
      %p182 = por %p180, %p181
      %s184 = sadd.s32 %s183, 1
      %p187 = scmp.eq.s32.totalorder %s18, 1
      %p188 = scmp.ne.s32.totalorder %s183, %s185
      %p189 = scmp.eq.s32.totalorder %s18, 0
      %p190 = por %p188, %p189
      %p191 = scmp.ne.s32.totalorder %s183, %s185
      %p192 = scmp.eq.s32.totalorder %s23, 1
      %p193 = por %p191, %p192
      %p194 = scmp.ne.s32.totalorder %s185, %s186
      %p195 = scmp.eq.s32.totalorder %s23, 0
      %p196 = por %p194, %p195
      %p197 = scmp.ne.s32.totalorder %s185, %s186
      %p198 = scmp.eq.s32.totalorder %s24, 1
      %p199 = por %p197, %p198
      %p201 = scmp.ne.s32.totalorder %s186, %s200
      %p202 = scmp.eq.s32.totalorder %s24, 0
      %p203 = por %p201, %p202
      %s205 = sadd.s32 %s204, 1
      %p208 = scmp.eq.s32.totalorder %s18, 1
      %p209 = scmp.ne.s32.totalorder %s204, %s206
      %p210 = scmp.eq.s32.totalorder %s18, 0
      %p211 = por %p209, %p210
      %p212 = scmp.ne.s32.totalorder %s204, %s206
      %p213 = scmp.eq.s32.totalorder %s23, 1
      %p214 = por %p212, %p213
      %p215 = scmp.ne.s32.totalorder %s206, %s207
      %p216 = scmp.eq.s32.totalorder %s23, 0
      %p217 = por %p215, %p216
      %p218 = scmp.ne.s32.totalorder %s206, %s207
      %p219 = scmp.eq.s32.totalorder %s24, 1
      %p220 = por %p218, %p219
      %p222 = scmp.ne.s32.totalorder %s207, %s221
      %p223 = scmp.eq.s32.totalorder %s24, 0
      %p224 = por %p222, %p223
      %s226 = sadd.s32 %s225, 1
      %p229 = scmp.eq.s32.totalorder %s18, 1
      %p230 = scmp.ne.s32.totalorder %s225, %s227
      %p231 = scmp.eq.s32.totalorder %s18, 0
      %p232 = por %p230, %p231
      %p233 = scmp.ne.s32.totalorder %s225, %s227
      %p234 = scmp.eq.s32.totalorder %s23, 1
      %p235 = por %p233, %p234
      %p236 = scmp.ne.s32.totalorder %s227, %s228
      %p237 = scmp.eq.s32.totalorder %s23, 0
      %p238 = por %p236, %p237
      %p239 = scmp.ne.s32.totalorder %s227, %s228
      %p240 = scmp.eq.s32.totalorder %s24, 1
      %p241 = por %p239, %p240
      %p243 = scmp.ne.s32.totalorder %s228, %s242
      %p244 = scmp.eq.s32.totalorder %s24, 0
      %p245 = por %p243, %p244
      %s246 = ssub.s32 %s18, %s25
      %p247 = scmp.eq.s32.totalorder %s246, 0
      %s249 = sadd.s32 %s248, 1
      %s250 = scalar_select %p247, %s248, %s249
      %p253 = pneg %p247
      %p254 = scmp.eq.s32.totalorder %s18, 1
      %p255 = por %p253, %p254
      %p256 = scmp.ne.s32.totalorder %s248, %s251
      %p257 = scmp.eq.s32.totalorder %s18, 0
      %p258 = por %p256, %p257
      %p259 = scmp.ne.s32.totalorder %s248, %s251
      %p260 = scmp.eq.s32.totalorder %s23, 1
      %p261 = por %p259, %p260
      %p262 = scmp.ne.s32.totalorder %s251, %s252
      %p263 = scmp.eq.s32.totalorder %s23, 0
      %p264 = por %p262, %p263
      %p265 = scmp.ne.s32.totalorder %s251, %s252
      %p266 = scmp.eq.s32.totalorder %s24, 1
      %p267 = por %p265, %p266
      %p269 = scmp.ne.s32.totalorder %s252, %s268
      %p270 = scmp.eq.s32.totalorder %s24, 0
      %p271 = por %p269, %p270
      %p272 = scmp.le.s32.totalorder 1, %s18
      %p273 = scmp.lt.s32.totalorder %s18, 3
      %p274 = pnand %p272, %p273
      %p275 = pneg %p274
      // Predicated region
      $region9: #{tpu_custom_call.1} parent=5 // pred_check
        _
      $region10: #{tpu_custom_call.1} parent=5 // pred_check_branch
        %277 = sbr.rel (%p274) target = $region12
      $region11: #{tpu_custom_call.1} parent=5 // pred_region
        %s278 = ssub.s32 %s18, 1
        // Predicated region
        $region13: #{tpu_custom_call.1} parent=11 // pred_check
          %p279 = pneg %p91
        $region14: #{tpu_custom_call.1} parent=11 // pred_check_branch
          %281 = sbr.rel (%p279) target = $region16
        $region15: #{tpu_custom_call.1} parent=11 // pred_region
          %s283 = ssub.s32 16384, 16384
          %284 = vsyncadd [#allocation3], %s283
          %s285 = sshll.u32 [#allocation2], 4
          %s286 = int_to_ptr.vmem [resolvable:$true] %s285
          %291 = dma.hbm_to_vmem [thread:$0]  %s2, 16384, %s286, [#allocation3], 256, 256, 16
        $region16: #{tpu_custom_call.1} parent=11 // pred_fallthru
          _
        // Predicated region
        $region17: #{tpu_custom_call.1} parent=11 // pred_check
          %p292 = pneg %p112
        $region18: #{tpu_custom_call.1} parent=11 // pred_check_branch
          %294 = sbr.rel (%p292) target = $region20
        $region19: #{tpu_custom_call.1} parent=11 // pred_region
          _
        $region20: #{tpu_custom_call.1} parent=11 // pred_fallthru
          _
        // Predicated region
        $region21: #{tpu_custom_call.1} parent=11 // pred_check
          %p295 = pneg %p133
        $region22: #{tpu_custom_call.1} parent=11 // pred_check_branch
          %297 = sbr.rel (%p295) target = $region24
        $region23: #{tpu_custom_call.1} parent=11 // pred_region
          %s299 = ssub.s32 16384, 16384
          %300 = vsyncadd [#allocation5], %s299
          %s301 = sshll.u32 [#allocation4], 4
          %s302 = int_to_ptr.vmem [resolvable:$true] %s301
          %307 = dma.hbm_to_vmem [thread:$0]  %s4, 16384, %s302, [#allocation5], 256, 256, 16
        $region24: #{tpu_custom_call.1} parent=11 // pred_fallthru
          _
        // Predicated region
        $region25: #{tpu_custom_call.1} parent=11 // pred_check
          %p308 = pneg %p154
        $region26: #{tpu_custom_call.1} parent=11 // pred_check_branch
          %310 = sbr.rel (%p308) target = $region28
        $region27: #{tpu_custom_call.1} parent=11 // pred_region
          _
        $region28: #{tpu_custom_call.1} parent=11 // pred_fallthru
          _
        // Predicated region
        $region29: #{tpu_custom_call.1} parent=11 // pred_check
          %p311 = pneg %p175
        $region30: #{tpu_custom_call.1} parent=11 // pred_check_branch
          %313 = sbr.rel (%p311) target = $region32
        $region31: #{tpu_custom_call.1} parent=11 // pred_region
          %s315 = ssub.s32 8192, 8192
          %316 = vsyncadd [#allocation5], %s315
          %s317 = sshll.u32 [#allocation6], 4
          %s318 = int_to_ptr.vmem [resolvable:$true] %s317
          %323 = dma.hbm_to_vmem [thread:$0]  %s6, 8192, %s318, [#allocation5], 128, 128, 8
        $region32: #{tpu_custom_call.1} parent=11 // pred_fallthru
          _
        // Predicated region
        $region33: #{tpu_custom_call.1} parent=11 // pred_check
          %p324 = pneg %p196
        $region34: #{tpu_custom_call.1} parent=11 // pred_check_branch
          %326 = sbr.rel (%p324) target = $region36
        $region35: #{tpu_custom_call.1} parent=11 // pred_region
          _
        $region36: #{tpu_custom_call.1} parent=11 // pred_fallthru
          _
        // Predicated region
        $region37: #{tpu_custom_call.1} parent=11 // pred_check
          %p327 = pneg %p217
        $region38: #{tpu_custom_call.1} parent=11 // pred_check_branch
          %329 = sbr.rel (%p327) target = $region40
        $region39: #{tpu_custom_call.1} parent=11 // pred_region
          _
        $region40: #{tpu_custom_call.1} parent=11 // pred_fallthru
          _
        // Predicated region
        $region41: #{tpu_custom_call.1} parent=11 // pred_check
          %p330 = pneg %p238
        $region42: #{tpu_custom_call.1} parent=11 // pred_check_branch
          %332 = sbr.rel (%p330) target = $region44
        $region43: #{tpu_custom_call.1} parent=11 // pred_region
          _
        $region44: #{tpu_custom_call.1} parent=11 // pred_fallthru
          _
      $region12: #{tpu_custom_call.1} parent=5 // pred_fallthru
        _
      %p333 = scmp.lt.s32.totalorder %s18, 2
      // Predicated region
      $region45: #{tpu_custom_call.1} parent=5 // pred_check
        %p334 = pneg %p333
      $region46: #{tpu_custom_call.1} parent=5 // pred_check_branch
        %336 = sbr.rel (%p334) target = $region48
      $region47: #{tpu_custom_call.1} parent=5 // pred_region
        // Predicated region
        $region49: #{tpu_custom_call.1} parent=47 // pred_check
          %p337 = pneg %p38
        $region50: #{tpu_custom_call.1} parent=47 // pred_check_branch
          %339 = sbr.rel (%p337) target = $region52
        $region51: #{tpu_custom_call.1} parent=47 // pred_region
          %p340 = scmp.lt.s32.totalorder %s18, 1
          %s341 = scalar_select %p340, %s18, 1
          %s342 = smul.addr %s341, 4
          %s343 = smul.addr %s342, 8
          %s344 = scalar_lea.vmem %s0, %s343
        $region52: #{tpu_custom_call.1} parent=47 // pred_fallthru
          _
        // Predicated region
        $region53: #{tpu_custom_call.1} parent=47 // pred_check
          %p345 = pneg %p64
        $region54: #{tpu_custom_call.1} parent=47 // pred_check_branch
          %347 = sbr.rel (%p345) target = $region56
        $region55: #{tpu_custom_call.1} parent=47 // pred_region
          %p348 = scmp.lt.s32.totalorder %s18, 1
          %s349 = scalar_select %p348, %s18, 1
          %s350 = smul.addr %s349, 4
          %s351 = smul.addr %s350, 8
          %s352 = scalar_lea.vmem %s1, %s351
        $region56: #{tpu_custom_call.1} parent=47 // pred_fallthru
          _
      $region48: #{tpu_custom_call.1} parent=5 // pred_fallthru
        _
      %p353 = scmp.le.s32.totalorder 1, %s18
      %p354 = scmp.lt.s32.totalorder %s18, 3
      %p355 = pnand %p353, %p354
      %p356 = pneg %p355
      // Predicated region
      $region57: #{tpu_custom_call.1} parent=5 // pred_check
        _
      $region58: #{tpu_custom_call.1} parent=5 // pred_check_branch
        %358 = sbr.rel (%p355) target = $region60
      $region59: #{tpu_custom_call.1} parent=5 // pred_region
        %s359 = ssub.s32 %s18, 1
        // Predicated region
        $region61: #{tpu_custom_call.1} parent=59 // pred_check
          %p360 = pneg %p91
        $region62: #{tpu_custom_call.1} parent=59 // pred_check_branch
          %362 = sbr.rel (%p360) target = $region64
        $region63: #{tpu_custom_call.1} parent=59 // pred_region
          %363 = dma.done [#allocation3], 16384
        $region64: #{tpu_custom_call.1} parent=59 // pred_fallthru
          _
        // Predicated region
        $region65: #{tpu_custom_call.1} parent=59 // pred_check
          %p364 = pneg %p133
        $region66: #{tpu_custom_call.1} parent=59 // pred_check_branch
          %366 = sbr.rel (%p364) target = $region68
        $region67: #{tpu_custom_call.1} parent=59 // pred_region
          %367 = dma.done [#allocation5], 16384
        $region68: #{tpu_custom_call.1} parent=59 // pred_fallthru
          _
        // Predicated region
        $region69: #{tpu_custom_call.1} parent=59 // pred_check
          %p368 = pneg %p175
        $region70: #{tpu_custom_call.1} parent=59 // pred_check_branch
          %370 = sbr.rel (%p368) target = $region72
        $region71: #{tpu_custom_call.1} parent=59 // pred_region
          %371 = dma.done [#allocation5], 8192
        $region72: #{tpu_custom_call.1} parent=59 // pred_fallthru
          _
        %p372 = scmp.lt.s32.totalorder %s23, 1
        %s373 = scalar_select %p372, %s23, 1
        %s374 = smul.addr %s373, 4
        %s375 = smul.addr %s374, 8
        %s376 = scalar_lea.vmem %s0, %s375
        %p377 = pneg %p44
        %p378 = pneg %p41
        %p379 = scmp.lt.s32.totalorder %s23, 1
        %s380 = scalar_select %p379, %s23, 1
        %s381 = smul.addr %s380, 4
        %s382 = smul.addr %s381, 8
        %s383 = scalar_lea.vmem %s1, %s382
        %p384 = pneg %p70
        %p385 = pneg %p67
        %p386 = pneg %p91
        %p387 = pneg %p88
        %p388 = pneg %p112
        %p389 = pneg %p109
        %p390 = pneg %p133
        %p391 = pneg %p130
        %p392 = pneg %p154
        %p393 = pneg %p151
        %p394 = pneg %p175
        %p395 = pneg %p172
        %p396 = pneg %p196
        %p397 = pneg %p193
        %p398 = pneg %p217
        %p399 = pneg %p214
        %p400 = pneg %p238
        %p401 = pneg %p235
        %p402 = pneg %p264
        %p403 = pneg %p261
        %p404 = scmp.lt.s32.totalorder %s23, 1
        %s405 = scalar_select %p404, %s23, 1
        %s406 = smul.addr %s405, 8
        %s407 = scalar_lea.vmem %s10, %s406
        %p408 = scmp.lt.s32.totalorder %s23, 1
        %s409 = scalar_select %p408, %s23, 1
        %s410 = smul.addr %s409, 4
        %s411 = smul.addr %s410, 8
        %s412 = scalar_lea.vmem %s0, %s411
        %p413 = scmp.lt.s32.totalorder %s23, 1
        %s414 = scalar_select %p413, %s23, 1
        %s415 = smul.addr %s414, 4
        %s416 = smul.addr %s415, 8
        %s417 = scalar_lea.vmem %s1, %s416
        %p418 = scmp.lt.s32.totalorder %s23, 1
        %s419 = scalar_select %p418, %s23, 1
        %s420 = smul.addr %s419, 8
        %s421 = scalar_lea.vmem %s10, %s420
        %v423 = vld [vmem:[#allocation2] sm:$0xff]
        %v424 = vld [vmem:[#allocation2 + $0x8] sm:$0xff]
        %v425 = vld [vmem:[#allocation2 + $0x10] sm:$0xff]
        %v426 = vld [vmem:[#allocation2 + $0x18] sm:$0xff]
        %v427 = vld [vmem:[#allocation2 + $0x20] sm:$0xff]
        %v428 = vld [vmem:[#allocation2 + $0x28] sm:$0xff]
        %v429 = vld [vmem:[#allocation2 + $0x30] sm:$0xff]
        %v430 = vld [vmem:[#allocation2 + $0x38] sm:$0xff]
        %v431 = vld [vmem:[#allocation2 + $0x40] sm:$0xff]
        %v432 = vld [vmem:[#allocation2 + $0x48] sm:$0xff]
        %v433 = vld [vmem:[#allocation2 + $0x50] sm:$0xff]
        %v434 = vld [vmem:[#allocation2 + $0x58] sm:$0xff]
        %v435 = vld [vmem:[#allocation2 + $0x60] sm:$0xff]
        %v436 = vld [vmem:[#allocation2 + $0x68] sm:$0xff]
        %v437 = vld [vmem:[#allocation2 + $0x70] sm:$0xff]
        %v438 = vld [vmem:[#allocation2 + $0x78] sm:$0xff]
        %v439 = vld [vmem:[#allocation2 + $0x80] sm:$0xff]
        %v440 = vld [vmem:[#allocation2 + $0x88] sm:$0xff]
        %v441 = vld [vmem:[#allocation2 + $0x90] sm:$0xff]
        %v442 = vld [vmem:[#allocation2 + $0x98] sm:$0xff]
        %v443 = vld [vmem:[#allocation2 + $0xa0] sm:$0xff]
        %v444 = vld [vmem:[#allocation2 + $0xa8] sm:$0xff]
        %v445 = vld [vmem:[#allocation2 + $0xb0] sm:$0xff]
        %v446 = vld [vmem:[#allocation2 + $0xb8] sm:$0xff]
        %v447 = vld [vmem:[#allocation2 + $0xc0] sm:$0xff]
        %v448 = vld [vmem:[#allocation2 + $0xc8] sm:$0xff]
        %v449 = vld [vmem:[#allocation2 + $0xd0] sm:$0xff]
        %v450 = vld [vmem:[#allocation2 + $0xd8] sm:$0xff]
        %v451 = vld [vmem:[#allocation2 + $0xe0] sm:$0xff]
        %v452 = vld [vmem:[#allocation2 + $0xe8] sm:$0xff]
        %v453 = vld [vmem:[#allocation2 + $0xf0] sm:$0xff]
        %v454 = vld [vmem:[#allocation2 + $0xf8] sm:$0xff]
        %v455 = vld [vmem:[#allocation2 + $0x100] sm:$0xff]
        %v456 = vld [vmem:[#allocation2 + $0x108] sm:$0xff]
        %v457 = vld [vmem:[#allocation2 + $0x110] sm:$0xff]
        %v458 = vld [vmem:[#allocation2 + $0x118] sm:$0xff]
        %v459 = vld [vmem:[#allocation2 + $0x120] sm:$0xff]
        %v460 = vld [vmem:[#allocation2 + $0x128] sm:$0xff]
        %v461 = vld [vmem:[#allocation2 + $0x130] sm:$0xff]
        %v462 = vld [vmem:[#allocation2 + $0x138] sm:$0xff]
        %v463 = vld [vmem:[#allocation2 + $0x140] sm:$0xff]
        %v464 = vld [vmem:[#allocation2 + $0x148] sm:$0xff]
        %v465 = vld [vmem:[#allocation2 + $0x150] sm:$0xff]
        %v466 = vld [vmem:[#allocation2 + $0x158] sm:$0xff]
        %v467 = vld [vmem:[#allocation2 + $0x160] sm:$0xff]
        %v468 = vld [vmem:[#allocation2 + $0x168] sm:$0xff]
        %v469 = vld [vmem:[#allocation2 + $0x170] sm:$0xff]
        %v470 = vld [vmem:[#allocation2 + $0x178] sm:$0xff]
        %v471 = vld [vmem:[#allocation2 + $0x180] sm:$0xff]
        %v472 = vld [vmem:[#allocation2 + $0x188] sm:$0xff]
        %v473 = vld [vmem:[#allocation2 + $0x190] sm:$0xff]
        %v474 = vld [vmem:[#allocation2 + $0x198] sm:$0xff]
        %v475 = vld [vmem:[#allocation2 + $0x1a0] sm:$0xff]
        %v476 = vld [vmem:[#allocation2 + $0x1a8] sm:$0xff]
        %v477 = vld [vmem:[#allocation2 + $0x1b0] sm:$0xff]
        %v478 = vld [vmem:[#allocation2 + $0x1b8] sm:$0xff]
        %v479 = vld [vmem:[#allocation2 + $0x1c0] sm:$0xff]
        %v480 = vld [vmem:[#allocation2 + $0x1c8] sm:$0xff]
        %v481 = vld [vmem:[#allocation2 + $0x1d0] sm:$0xff]
        %v482 = vld [vmem:[#allocation2 + $0x1d8] sm:$0xff]
        %v483 = vld [vmem:[#allocation2 + $0x1e0] sm:$0xff]
        %v484 = vld [vmem:[#allocation2 + $0x1e8] sm:$0xff]
        %v485 = vld [vmem:[#allocation2 + $0x1f0] sm:$0xff]
        %v486 = vld [vmem:[#allocation2 + $0x1f8] sm:$0xff]
        %v487 = vld [vmem:[#allocation2 + $0x200] sm:$0xff]
        %v488 = vld [vmem:[#allocation2 + $0x208] sm:$0xff]
        %v489 = vld [vmem:[#allocation2 + $0x210] sm:$0xff]
        %v490 = vld [vmem:[#allocation2 + $0x218] sm:$0xff]
        %v491 = vld [vmem:[#allocation2 + $0x220] sm:$0xff]
        %v492 = vld [vmem:[#allocation2 + $0x228] sm:$0xff]
        %v493 = vld [vmem:[#allocation2 + $0x230] sm:$0xff]
        %v494 = vld [vmem:[#allocation2 + $0x238] sm:$0xff]
        %v495 = vld [vmem:[#allocation2 + $0x240] sm:$0xff]
        %v496 = vld [vmem:[#allocation2 + $0x248] sm:$0xff]
        %v497 = vld [vmem:[#allocation2 + $0x250] sm:$0xff]
        %v498 = vld [vmem:[#allocation2 + $0x258] sm:$0xff]
        %v499 = vld [vmem:[#allocation2 + $0x260] sm:$0xff]
        %v500 = vld [vmem:[#allocation2 + $0x268] sm:$0xff]
        %v501 = vld [vmem:[#allocation2 + $0x270] sm:$0xff]
        %v502 = vld [vmem:[#allocation2 + $0x278] sm:$0xff]
        %v503 = vld [vmem:[#allocation2 + $0x280] sm:$0xff]
        %v504 = vld [vmem:[#allocation2 + $0x288] sm:$0xff]
        %v505 = vld [vmem:[#allocation2 + $0x290] sm:$0xff]
        %v506 = vld [vmem:[#allocation2 + $0x298] sm:$0xff]
        %v507 = vld [vmem:[#allocation2 + $0x2a0] sm:$0xff]
        %v508 = vld [vmem:[#allocation2 + $0x2a8] sm:$0xff]
        %v509 = vld [vmem:[#allocation2 + $0x2b0] sm:$0xff]
        %v510 = vld [vmem:[#allocation2 + $0x2b8] sm:$0xff]
        %v511 = vld [vmem:[#allocation2 + $0x2c0] sm:$0xff]
        %v512 = vld [vmem:[#allocation2 + $0x2c8] sm:$0xff]
        %v513 = vld [vmem:[#allocation2 + $0x2d0] sm:$0xff]
        %v514 = vld [vmem:[#allocation2 + $0x2d8] sm:$0xff]
        %v515 = vld [vmem:[#allocation2 + $0x2e0] sm:$0xff]
        %v516 = vld [vmem:[#allocation2 + $0x2e8] sm:$0xff]
        %v517 = vld [vmem:[#allocation2 + $0x2f0] sm:$0xff]
        %v518 = vld [vmem:[#allocation2 + $0x2f8] sm:$0xff]
        %v519 = vld [vmem:[#allocation2 + $0x300] sm:$0xff]
        %v520 = vld [vmem:[#allocation2 + $0x308] sm:$0xff]
        %v521 = vld [vmem:[#allocation2 + $0x310] sm:$0xff]
        %v522 = vld [vmem:[#allocation2 + $0x318] sm:$0xff]
        %v523 = vld [vmem:[#allocation2 + $0x320] sm:$0xff]
        %v524 = vld [vmem:[#allocation2 + $0x328] sm:$0xff]
        %v525 = vld [vmem:[#allocation2 + $0x330] sm:$0xff]
        %v526 = vld [vmem:[#allocation2 + $0x338] sm:$0xff]
        %v527 = vld [vmem:[#allocation2 + $0x340] sm:$0xff]
        %v528 = vld [vmem:[#allocation2 + $0x348] sm:$0xff]
        %v529 = vld [vmem:[#allocation2 + $0x350] sm:$0xff]
        %v530 = vld [vmem:[#allocation2 + $0x358] sm:$0xff]
        %v531 = vld [vmem:[#allocation2 + $0x360] sm:$0xff]
        %v532 = vld [vmem:[#allocation2 + $0x368] sm:$0xff]
        %v533 = vld [vmem:[#allocation2 + $0x370] sm:$0xff]
        %v534 = vld [vmem:[#allocation2 + $0x378] sm:$0xff]
        %v535 = vld [vmem:[#allocation2 + $0x380] sm:$0xff]
        %v536 = vld [vmem:[#allocation2 + $0x388] sm:$0xff]
        %v537 = vld [vmem:[#allocation2 + $0x390] sm:$0xff]
        %v538 = vld [vmem:[#allocation2 + $0x398] sm:$0xff]
        %v539 = vld [vmem:[#allocation2 + $0x3a0] sm:$0xff]
        %v540 = vld [vmem:[#allocation2 + $0x3a8] sm:$0xff]
        %v541 = vld [vmem:[#allocation2 + $0x3b0] sm:$0xff]
        %v542 = vld [vmem:[#allocation2 + $0x3b8] sm:$0xff]
        %v543 = vld [vmem:[#allocation2 + $0x3c0] sm:$0xff]
        %v544 = vld [vmem:[#allocation2 + $0x3c8] sm:$0xff]
        %v545 = vld [vmem:[#allocation2 + $0x3d0] sm:$0xff]
        %v546 = vld [vmem:[#allocation2 + $0x3d8] sm:$0xff]
        %v547 = vld [vmem:[#allocation2 + $0x3e0] sm:$0xff]
        %v548 = vld [vmem:[#allocation2 + $0x3e8] sm:$0xff]
        %v549 = vld [vmem:[#allocation2 + $0x3f0] sm:$0xff]
        %v550 = vld [vmem:[#allocation2 + $0x3f8] sm:$0xff]
        %v551 = vld [vmem:[%s3] sm:$0xf]
        %v552 = vld [vmem:[%s412] sm:$0xff]
        %v553 = vld [vmem:[%s412 + $0x8] sm:$0xff]
        %v554 = vld [vmem:[%s412 + $0x10] sm:$0xff]
        %v555 = vld [vmem:[%s412 + $0x18] sm:$0xff]
        %v556 = vpack.c.bf16 %v552, %v552
        %v557 = vpack.c.bf16 %v553, %v553
        %v558 = vpack.c.bf16 %v554, %v554
        %v559 = vpack.c.bf16 %v555, %v555
        %v561 = vlaneseq
        %v562 = vshrl.u32 %v561, 7
        %v563 = vsub.s32 0, %v562
        %v564 = vrot.slane %v551, %v563
        %v565 = vlaneseq
        %v566 = vshrl.u32 %v565, 7
        %v567 = vsub.s32 1, %v566
        %v568 = vrot.slane %v551, %v567
        %v569 = vlaneseq
        %v570 = vshrl.u32 %v569, 7
        %v571 = vsub.s32 2, %v570
        %v572 = vrot.slane %v551, %v571
        %v573 = vlaneseq
        %v574 = vshrl.u32 %v573, 7
        %v575 = vsub.s32 3, %v574
        %v576 = vrot.slane %v551, %v575
        %v709 = vunpack.c.l.b16 %v423
        %v710 = vunpack.c.h.b16 %v423
        %v711 = vunpack.c.l.b16 %v424
        %v712 = vunpack.c.h.b16 %v424
        %v713 = vunpack.c.l.b16 %v425
        %v714 = vunpack.c.h.b16 %v425
        %v715 = vunpack.c.l.b16 %v426
        %v716 = vunpack.c.h.b16 %v426
        %v717 = vunpack.c.l.b16 %v427
        %v718 = vunpack.c.h.b16 %v427
        %v719 = vunpack.c.l.b16 %v428
        %v720 = vunpack.c.h.b16 %v428
        %v721 = vunpack.c.l.b16 %v429
        %v722 = vunpack.c.h.b16 %v429
        %v723 = vunpack.c.l.b16 %v430
        %v724 = vunpack.c.h.b16 %v430
        %v725 = vunpack.c.l.b16 %v431
        %v726 = vunpack.c.h.b16 %v431
        %v727 = vunpack.c.l.b16 %v432
        %v728 = vunpack.c.h.b16 %v432
        %v729 = vunpack.c.l.b16 %v433
        %v730 = vunpack.c.h.b16 %v433
        %v731 = vunpack.c.l.b16 %v434
        %v732 = vunpack.c.h.b16 %v434
        %v733 = vunpack.c.l.b16 %v435
        %v734 = vunpack.c.h.b16 %v435
        %v735 = vunpack.c.l.b16 %v436
        %v736 = vunpack.c.h.b16 %v436
        %v737 = vunpack.c.l.b16 %v437
        %v738 = vunpack.c.h.b16 %v437
        %v739 = vunpack.c.l.b16 %v438
        %v740 = vunpack.c.h.b16 %v438
        %v741 = vunpack.c.l.b16 %v439
        %v742 = vunpack.c.h.b16 %v439
        %v743 = vunpack.c.l.b16 %v440
        %v744 = vunpack.c.h.b16 %v440
        %v745 = vunpack.c.l.b16 %v441
        %v746 = vunpack.c.h.b16 %v441
        %v747 = vunpack.c.l.b16 %v442
        %v748 = vunpack.c.h.b16 %v442
        %v749 = vunpack.c.l.b16 %v443
        %v750 = vunpack.c.h.b16 %v443
        %v751 = vunpack.c.l.b16 %v444
        %v752 = vunpack.c.h.b16 %v444
        %v753 = vunpack.c.l.b16 %v445
        %v754 = vunpack.c.h.b16 %v445
        %v755 = vunpack.c.l.b16 %v446
        %v756 = vunpack.c.h.b16 %v446
        %v757 = vunpack.c.l.b16 %v447
        %v758 = vunpack.c.h.b16 %v447
        %v759 = vunpack.c.l.b16 %v448
        %v760 = vunpack.c.h.b16 %v448
        %v761 = vunpack.c.l.b16 %v449
        %v762 = vunpack.c.h.b16 %v449
        %v763 = vunpack.c.l.b16 %v450
        %v764 = vunpack.c.h.b16 %v450
        %v765 = vunpack.c.l.b16 %v451
        %v766 = vunpack.c.h.b16 %v451
        %v767 = vunpack.c.l.b16 %v452
        %v768 = vunpack.c.h.b16 %v452
        %v769 = vunpack.c.l.b16 %v453
        %v770 = vunpack.c.h.b16 %v453
        %v771 = vunpack.c.l.b16 %v454
        %v772 = vunpack.c.h.b16 %v454
        %v773 = vunpack.c.l.b16 %v455
        %v774 = vunpack.c.h.b16 %v455
        %v775 = vunpack.c.l.b16 %v456
        %v776 = vunpack.c.h.b16 %v456
        %v777 = vunpack.c.l.b16 %v457
        %v778 = vunpack.c.h.b16 %v457
        %v779 = vunpack.c.l.b16 %v458
        %v780 = vunpack.c.h.b16 %v458
        %v781 = vunpack.c.l.b16 %v459
        %v782 = vunpack.c.h.b16 %v459
        %v783 = vunpack.c.l.b16 %v460
        %v784 = vunpack.c.h.b16 %v460
        %v785 = vunpack.c.l.b16 %v461
        %v786 = vunpack.c.h.b16 %v461
        %v787 = vunpack.c.l.b16 %v462
        %v788 = vunpack.c.h.b16 %v462
        %v789 = vunpack.c.l.b16 %v463
        %v790 = vunpack.c.h.b16 %v463
        %v791 = vunpack.c.l.b16 %v464
        %v792 = vunpack.c.h.b16 %v464
        %v793 = vunpack.c.l.b16 %v465
        %v794 = vunpack.c.h.b16 %v465
        %v795 = vunpack.c.l.b16 %v466
        %v796 = vunpack.c.h.b16 %v466
        %v797 = vunpack.c.l.b16 %v467
        %v798 = vunpack.c.h.b16 %v467
        %v799 = vunpack.c.l.b16 %v468
        %v800 = vunpack.c.h.b16 %v468
        %v801 = vunpack.c.l.b16 %v469
        %v802 = vunpack.c.h.b16 %v469
        %v803 = vunpack.c.l.b16 %v470
        %v804 = vunpack.c.h.b16 %v470
        %v805 = vunpack.c.l.b16 %v471
        %v806 = vunpack.c.h.b16 %v471
        %v807 = vunpack.c.l.b16 %v472
        %v808 = vunpack.c.h.b16 %v472
        %v809 = vunpack.c.l.b16 %v473
        %v810 = vunpack.c.h.b16 %v473
        %v811 = vunpack.c.l.b16 %v474
        %v812 = vunpack.c.h.b16 %v474
        %v813 = vunpack.c.l.b16 %v475
        %v814 = vunpack.c.h.b16 %v475
        %v815 = vunpack.c.l.b16 %v476
        %v816 = vunpack.c.h.b16 %v476
        %v817 = vunpack.c.l.b16 %v477
        %v818 = vunpack.c.h.b16 %v477
        %v819 = vunpack.c.l.b16 %v478
        %v820 = vunpack.c.h.b16 %v478
        %v821 = vunpack.c.l.b16 %v479
        %v822 = vunpack.c.h.b16 %v479
        %v823 = vunpack.c.l.b16 %v480
        %v824 = vunpack.c.h.b16 %v480
        %v825 = vunpack.c.l.b16 %v481
        %v826 = vunpack.c.h.b16 %v481
        %v827 = vunpack.c.l.b16 %v482
        %v828 = vunpack.c.h.b16 %v482
        %v829 = vunpack.c.l.b16 %v483
        %v830 = vunpack.c.h.b16 %v483
        %v831 = vunpack.c.l.b16 %v484
        %v832 = vunpack.c.h.b16 %v484
        %v833 = vunpack.c.l.b16 %v485
        %v834 = vunpack.c.h.b16 %v485
        %v835 = vunpack.c.l.b16 %v486
        %v836 = vunpack.c.h.b16 %v486
        %v837 = vunpack.c.l.b16 %v487
        %v838 = vunpack.c.h.b16 %v487
        %v839 = vunpack.c.l.b16 %v488
        %v840 = vunpack.c.h.b16 %v488
        %v841 = vunpack.c.l.b16 %v489
        %v842 = vunpack.c.h.b16 %v489
        %v843 = vunpack.c.l.b16 %v490
        %v844 = vunpack.c.h.b16 %v490
        %v845 = vunpack.c.l.b16 %v491
        %v846 = vunpack.c.h.b16 %v491
        %v847 = vunpack.c.l.b16 %v492
        %v848 = vunpack.c.h.b16 %v492
        %v849 = vunpack.c.l.b16 %v493
        %v850 = vunpack.c.h.b16 %v493
        %v851 = vunpack.c.l.b16 %v494
        %v852 = vunpack.c.h.b16 %v494
        %v853 = vunpack.c.l.b16 %v495
        %v854 = vunpack.c.h.b16 %v495
        %v855 = vunpack.c.l.b16 %v496
        %v856 = vunpack.c.h.b16 %v496
        %v857 = vunpack.c.l.b16 %v497
        %v858 = vunpack.c.h.b16 %v497
        %v859 = vunpack.c.l.b16 %v498
        %v860 = vunpack.c.h.b16 %v498
        %v861 = vunpack.c.l.b16 %v499
        %v862 = vunpack.c.h.b16 %v499
        %v863 = vunpack.c.l.b16 %v500
        %v864 = vunpack.c.h.b16 %v500
        %v865 = vunpack.c.l.b16 %v501
        %v866 = vunpack.c.h.b16 %v501
        %v867 = vunpack.c.l.b16 %v502
        %v868 = vunpack.c.h.b16 %v502
        %v869 = vunpack.c.l.b16 %v503
        %v870 = vunpack.c.h.b16 %v503
        %v871 = vunpack.c.l.b16 %v504
        %v872 = vunpack.c.h.b16 %v504
        %v873 = vunpack.c.l.b16 %v505
        %v874 = vunpack.c.h.b16 %v505
        %v875 = vunpack.c.l.b16 %v506
        %v876 = vunpack.c.h.b16 %v506
        %v877 = vunpack.c.l.b16 %v507
        %v878 = vunpack.c.h.b16 %v507
        %v879 = vunpack.c.l.b16 %v508
        %v880 = vunpack.c.h.b16 %v508
        %v881 = vunpack.c.l.b16 %v509
        %v882 = vunpack.c.h.b16 %v509
        %v883 = vunpack.c.l.b16 %v510
        %v884 = vunpack.c.h.b16 %v510
        %v885 = vunpack.c.l.b16 %v511
        %v886 = vunpack.c.h.b16 %v511
        %v887 = vunpack.c.l.b16 %v512
        %v888 = vunpack.c.h.b16 %v512
        %v889 = vunpack.c.l.b16 %v513
        %v890 = vunpack.c.h.b16 %v513
        %v891 = vunpack.c.l.b16 %v514
        %v892 = vunpack.c.h.b16 %v514
        %v893 = vunpack.c.l.b16 %v515
        %v894 = vunpack.c.h.b16 %v515
        %v895 = vunpack.c.l.b16 %v516
        %v896 = vunpack.c.h.b16 %v516
        %v897 = vunpack.c.l.b16 %v517
        %v898 = vunpack.c.h.b16 %v517
        %v899 = vunpack.c.l.b16 %v518
        %v900 = vunpack.c.h.b16 %v518
        %v901 = vunpack.c.l.b16 %v519
        %v902 = vunpack.c.h.b16 %v519
        %v903 = vunpack.c.l.b16 %v520
        %v904 = vunpack.c.h.b16 %v520
        %v905 = vunpack.c.l.b16 %v521
        %v906 = vunpack.c.h.b16 %v521
        %v907 = vunpack.c.l.b16 %v522
        %v908 = vunpack.c.h.b16 %v522
        %v909 = vunpack.c.l.b16 %v523
        %v910 = vunpack.c.h.b16 %v523
        %v911 = vunpack.c.l.b16 %v524
        %v912 = vunpack.c.h.b16 %v524
        %v913 = vunpack.c.l.b16 %v525
        %v914 = vunpack.c.h.b16 %v525
        %v915 = vunpack.c.l.b16 %v526
        %v916 = vunpack.c.h.b16 %v526
        %v917 = vunpack.c.l.b16 %v527
        %v918 = vunpack.c.h.b16 %v527
        %v919 = vunpack.c.l.b16 %v528
        %v920 = vunpack.c.h.b16 %v528
        %v921 = vunpack.c.l.b16 %v529
        %v922 = vunpack.c.h.b16 %v529
        %v923 = vunpack.c.l.b16 %v530
        %v924 = vunpack.c.h.b16 %v530
        %v925 = vunpack.c.l.b16 %v531
        %v926 = vunpack.c.h.b16 %v531
        %v927 = vunpack.c.l.b16 %v532
        %v928 = vunpack.c.h.b16 %v532
        %v929 = vunpack.c.l.b16 %v533
        %v930 = vunpack.c.h.b16 %v533
        %v931 = vunpack.c.l.b16 %v534
        %v932 = vunpack.c.h.b16 %v534
        %v933 = vunpack.c.l.b16 %v535
        %v934 = vunpack.c.h.b16 %v535
        %v935 = vunpack.c.l.b16 %v536
        %v936 = vunpack.c.h.b16 %v536
        %v937 = vunpack.c.l.b16 %v537
        %v938 = vunpack.c.h.b16 %v537
        %v939 = vunpack.c.l.b16 %v538
        %v940 = vunpack.c.h.b16 %v538
        %v941 = vunpack.c.l.b16 %v539
        %v942 = vunpack.c.h.b16 %v539
        %v943 = vunpack.c.l.b16 %v540
        %v944 = vunpack.c.h.b16 %v540
        %v945 = vunpack.c.l.b16 %v541
        %v946 = vunpack.c.h.b16 %v541
        %v947 = vunpack.c.l.b16 %v542
        %v948 = vunpack.c.h.b16 %v542
        %v949 = vunpack.c.l.b16 %v543
        %v950 = vunpack.c.h.b16 %v543
        %v951 = vunpack.c.l.b16 %v544
        %v952 = vunpack.c.h.b16 %v544
        %v953 = vunpack.c.l.b16 %v545
        %v954 = vunpack.c.h.b16 %v545
        %v955 = vunpack.c.l.b16 %v546
        %v956 = vunpack.c.h.b16 %v546
        %v957 = vunpack.c.l.b16 %v547
        %v958 = vunpack.c.h.b16 %v547
        %v959 = vunpack.c.l.b16 %v548
        %v960 = vunpack.c.h.b16 %v548
        %v961 = vunpack.c.l.b16 %v549
        %v962 = vunpack.c.h.b16 %v549
        %v963 = vunpack.c.l.b16 %v550
        %v964 = vunpack.c.h.b16 %v550
        %v965 = vpack.c.b16 %v713, %v709
        %v966 = vpack.c.b16 %v714, %v710
        %v967 = vpack.c.b16 %v715, %v711
        %v968 = vpack.c.b16 %v716, %v712
        %v969 = vpack.c.b16 %v721, %v717
        %v970 = vpack.c.b16 %v722, %v718
        %v971 = vpack.c.b16 %v723, %v719
        %v972 = vpack.c.b16 %v724, %v720
        %v973 = vpack.c.b16 %v729, %v725
        %v974 = vpack.c.b16 %v730, %v726
        %v975 = vpack.c.b16 %v731, %v727
        %v976 = vpack.c.b16 %v732, %v728
        %v977 = vpack.c.b16 %v737, %v733
        %v978 = vpack.c.b16 %v738, %v734
        %v979 = vpack.c.b16 %v739, %v735
        %v980 = vpack.c.b16 %v740, %v736
        %v981 = vpack.c.b16 %v745, %v741
        %v982 = vpack.c.b16 %v746, %v742
        %v983 = vpack.c.b16 %v747, %v743
        %v984 = vpack.c.b16 %v748, %v744
        %v985 = vpack.c.b16 %v753, %v749
        %v986 = vpack.c.b16 %v754, %v750
        %v987 = vpack.c.b16 %v755, %v751
        %v988 = vpack.c.b16 %v756, %v752
        %v989 = vpack.c.b16 %v761, %v757
        %v990 = vpack.c.b16 %v762, %v758
        %v991 = vpack.c.b16 %v763, %v759
        %v992 = vpack.c.b16 %v764, %v760
        %v993 = vpack.c.b16 %v769, %v765
        %v994 = vpack.c.b16 %v770, %v766
        %v995 = vpack.c.b16 %v771, %v767
        %v996 = vpack.c.b16 %v772, %v768
        %v997 = vpack.c.b16 %v777, %v773
        %v998 = vpack.c.b16 %v778, %v774
        %v999 = vpack.c.b16 %v779, %v775
        %v1000 = vpack.c.b16 %v780, %v776
        %v1001 = vpack.c.b16 %v785, %v781
        %v1002 = vpack.c.b16 %v786, %v782
        %v1003 = vpack.c.b16 %v787, %v783
        %v1004 = vpack.c.b16 %v788, %v784
        %v1005 = vpack.c.b16 %v793, %v789
        %v1006 = vpack.c.b16 %v794, %v790
        %v1007 = vpack.c.b16 %v795, %v791
        %v1008 = vpack.c.b16 %v796, %v792
        %v1009 = vpack.c.b16 %v801, %v797
        %v1010 = vpack.c.b16 %v802, %v798
        %v1011 = vpack.c.b16 %v803, %v799
        %v1012 = vpack.c.b16 %v804, %v800
        %v1013 = vpack.c.b16 %v809, %v805
        %v1014 = vpack.c.b16 %v810, %v806
        %v1015 = vpack.c.b16 %v811, %v807
        %v1016 = vpack.c.b16 %v812, %v808
        %v1017 = vpack.c.b16 %v817, %v813
        %v1018 = vpack.c.b16 %v818, %v814
        %v1019 = vpack.c.b16 %v819, %v815
        %v1020 = vpack.c.b16 %v820, %v816
        %v1021 = vpack.c.b16 %v825, %v821
        %v1022 = vpack.c.b16 %v826, %v822
        %v1023 = vpack.c.b16 %v827, %v823
        %v1024 = vpack.c.b16 %v828, %v824
        %v1025 = vpack.c.b16 %v833, %v829
        %v1026 = vpack.c.b16 %v834, %v830
        %v1027 = vpack.c.b16 %v835, %v831
        %v1028 = vpack.c.b16 %v836, %v832
        %v1029 = vpack.c.b16 %v841, %v837
        %v1030 = vpack.c.b16 %v842, %v838
        %v1031 = vpack.c.b16 %v843, %v839
        %v1032 = vpack.c.b16 %v844, %v840
        %v1033 = vpack.c.b16 %v849, %v845
        %v1034 = vpack.c.b16 %v850, %v846
        %v1035 = vpack.c.b16 %v851, %v847
        %v1036 = vpack.c.b16 %v852, %v848
        %v1037 = vpack.c.b16 %v857, %v853
        %v1038 = vpack.c.b16 %v858, %v854
        %v1039 = vpack.c.b16 %v859, %v855
        %v1040 = vpack.c.b16 %v860, %v856
        %v1041 = vpack.c.b16 %v865, %v861
        %v1042 = vpack.c.b16 %v866, %v862
        %v1043 = vpack.c.b16 %v867, %v863
        %v1044 = vpack.c.b16 %v868, %v864
        %v1045 = vpack.c.b16 %v873, %v869
        %v1046 = vpack.c.b16 %v874, %v870
        %v1047 = vpack.c.b16 %v875, %v871
        %v1048 = vpack.c.b16 %v876, %v872
        %v1049 = vpack.c.b16 %v881, %v877
        %v1050 = vpack.c.b16 %v882, %v878
        %v1051 = vpack.c.b16 %v883, %v879
        %v1052 = vpack.c.b16 %v884, %v880
        %v1053 = vpack.c.b16 %v889, %v885
        %v1054 = vpack.c.b16 %v890, %v886
        %v1055 = vpack.c.b16 %v891, %v887
        %v1056 = vpack.c.b16 %v892, %v888
        %v1057 = vpack.c.b16 %v897, %v893
        %v1058 = vpack.c.b16 %v898, %v894
        %v1059 = vpack.c.b16 %v899, %v895
        %v1060 = vpack.c.b16 %v900, %v896
        %v1061 = vpack.c.b16 %v905, %v901
        %v1062 = vpack.c.b16 %v906, %v902
        %v1063 = vpack.c.b16 %v907, %v903
        %v1064 = vpack.c.b16 %v908, %v904
        %v1065 = vpack.c.b16 %v913, %v909
        %v1066 = vpack.c.b16 %v914, %v910
        %v1067 = vpack.c.b16 %v915, %v911
        %v1068 = vpack.c.b16 %v916, %v912
        %v1069 = vpack.c.b16 %v921, %v917
        %v1070 = vpack.c.b16 %v922, %v918
        %v1071 = vpack.c.b16 %v923, %v919
        %v1072 = vpack.c.b16 %v924, %v920
        %v1073 = vpack.c.b16 %v929, %v925
        %v1074 = vpack.c.b16 %v930, %v926
        %v1075 = vpack.c.b16 %v931, %v927
        %v1076 = vpack.c.b16 %v932, %v928
        %v1077 = vpack.c.b16 %v937, %v933
        %v1078 = vpack.c.b16 %v938, %v934
        %v1079 = vpack.c.b16 %v939, %v935
        %v1080 = vpack.c.b16 %v940, %v936
        %v1081 = vpack.c.b16 %v945, %v941
        %v1082 = vpack.c.b16 %v946, %v942
        %v1083 = vpack.c.b16 %v947, %v943
        %v1084 = vpack.c.b16 %v948, %v944
        %v1085 = vpack.c.b16 %v953, %v949
        %v1086 = vpack.c.b16 %v954, %v950
        %v1087 = vpack.c.b16 %v955, %v951
        %v1088 = vpack.c.b16 %v956, %v952
        %v1089 = vpack.c.b16 %v961, %v957
        %v1090 = vpack.c.b16 %v962, %v958
        %v1091 = vpack.c.b16 %v963, %v959
        %v1092 = vpack.c.b16 %v964, %v960
        %1221 = vmatprep.subr.bf16.mxu0 %v966
        %1222 = vmatpush1.bf16.msra.mxu0 %v965
        %1223 = vmatprep.subr.bf16.mxu0 %v970
        %1224 = vmatpush1.bf16.msra.mxu0 %v969
        %1225 = vmatprep.subr.bf16.mxu0 %v974
        %1226 = vmatpush1.bf16.msra.mxu0 %v973
        %1227 = vmatprep.subr.bf16.mxu0 %v978
        %1228 = vmatpush1.bf16.msra.mxu0 %v977
        %1229 = vmatprep.subr.bf16.mxu0 %v982
        %1230 = vmatpush1.bf16.msra.mxu0 %v981
        %1231 = vmatprep.subr.bf16.mxu0 %v986
        %1232 = vmatpush1.bf16.msra.mxu0 %v985
        %1233 = vmatprep.subr.bf16.mxu0 %v990
        %1234 = vmatpush1.bf16.msra.mxu0 %v989
        %1235 = vmatprep.subr.bf16.mxu0 %v994
        %1236 = vmatpush1.bf16.msra.mxu0 %v993
        %1237 = vmatprep.subr.bf16.mxu0 %v998
        %1238 = vmatpush1.bf16.msra.mxu0 %v997
        %1239 = vmatprep.subr.bf16.mxu0 %v1002
        %1240 = vmatpush1.bf16.msra.mxu0 %v1001
        %1241 = vmatprep.subr.bf16.mxu0 %v1006
        %1242 = vmatpush1.bf16.msra.mxu0 %v1005
        %1243 = vmatprep.subr.bf16.mxu0 %v1010
        %1244 = vmatpush1.bf16.msra.mxu0 %v1009
        %1245 = vmatprep.subr.bf16.mxu0 %v1014
        %1246 = vmatpush1.bf16.msra.mxu0 %v1013
        %1247 = vmatprep.subr.bf16.mxu0 %v1018
        %1248 = vmatpush1.bf16.msra.mxu0 %v1017
        %1249 = vmatprep.subr.bf16.mxu0 %v1022
        %1250 = vmatpush1.bf16.msra.mxu0 %v1021
        %1251 = vmatprep.subr.bf16.mxu0 %v1026
        %1252 = vmatpush1.bf16.msra.mxu0 %v1025
        %1253 = vmatprep.mubr.bf16.mxu0 %v557
        %1254 = vmatmul.mubr.bf16.gmra.mrb[0].mxu0 %v556
        %v1255 = vpop.f32.mrb[0].mxu0
        %v1256 = vadd.f32 %v564, %v1255
        %v1257 = vpop.f32.mrb[0].mxu0
        %v1258 = vadd.f32 %v568, %v1257
        %v1259 = vpop.f32.mrb[0].mxu0
        %v1260 = vpop.f32.mrb[0].mxu0
        %1261 = vdwg.mxu0
        %1262 = vmatprep.subr.bf16.mxu0 %v1030
        %1263 = vmatpush1.bf16.msra.mxu0 %v1029
        %1264 = vmatprep.subr.bf16.mxu0 %v1034
        %1265 = vmatpush1.bf16.msra.mxu0 %v1033
        %1266 = vmatprep.subr.bf16.mxu0 %v1038
        %1267 = vmatpush1.bf16.msra.mxu0 %v1037
        %1268 = vmatprep.subr.bf16.mxu0 %v1042
        %1269 = vmatpush1.bf16.msra.mxu0 %v1041
        %1270 = vmatprep.subr.bf16.mxu0 %v1046
        %1271 = vmatpush1.bf16.msra.mxu0 %v1045
        %1272 = vmatprep.subr.bf16.mxu0 %v1050
        %1273 = vmatpush1.bf16.msra.mxu0 %v1049
        %1274 = vmatprep.subr.bf16.mxu0 %v1054
        %1275 = vmatpush1.bf16.msra.mxu0 %v1053
        %1276 = vmatprep.subr.bf16.mxu0 %v1058
        %1277 = vmatpush1.bf16.msra.mxu0 %v1057
        %1278 = vmatprep.subr.bf16.mxu0 %v1062
        %1279 = vmatpush1.bf16.msra.mxu0 %v1061
        %1280 = vmatprep.subr.bf16.mxu0 %v1066
        %1281 = vmatpush1.bf16.msra.mxu0 %v1065
        %1282 = vmatprep.subr.bf16.mxu0 %v1070
        %1283 = vmatpush1.bf16.msra.mxu0 %v1069
        %1284 = vmatprep.subr.bf16.mxu0 %v1074
        %1285 = vmatpush1.bf16.msra.mxu0 %v1073
        %1286 = vmatprep.subr.bf16.mxu0 %v1078
        %1287 = vmatpush1.bf16.msra.mxu0 %v1077
        %1288 = vmatprep.subr.bf16.mxu0 %v1082
        %1289 = vmatpush1.bf16.msra.mxu0 %v1081
        %1290 = vmatprep.subr.bf16.mxu0 %v1086
        %1291 = vmatpush1.bf16.msra.mxu0 %v1085
        %1292 = vmatprep.subr.bf16.mxu0 %v1090
        %1293 = vmatpush1.bf16.msra.mxu0 %v1089
        %1294 = vmatprep.mubr.bf16.mxu0 %v559
        %1295 = vmatmul.mubr.bf16.gmra.mrb[0].mxu0 %v558
        %v1296 = vpop.f32.mrb[0].mxu0
        %v1297 = vadd.f32 %v1256, %v1296
        %v1298 = vpop.f32.mrb[0].mxu0
        %v1299 = vadd.f32 %v1258, %v1298
        %v1300 = vpop.f32.mrb[0].mxu0
        %v1301 = vpop.f32.mrb[0].mxu0
        %1302 = vdwg.mxu0
        %1303 = vmatprep.subr.bf16.mxu0 %v968
        %1304 = vmatpush1.bf16.msra.mxu0 %v967
        %1305 = vmatprep.subr.bf16.mxu0 %v972
        %1306 = vmatpush1.bf16.msra.mxu0 %v971
        %1307 = vmatprep.subr.bf16.mxu0 %v976
        %1308 = vmatpush1.bf16.msra.mxu0 %v975
        %1309 = vmatprep.subr.bf16.mxu0 %v980
        %1310 = vmatpush1.bf16.msra.mxu0 %v979
        %1311 = vmatprep.subr.bf16.mxu0 %v984
        %1312 = vmatpush1.bf16.msra.mxu0 %v983
        %1313 = vmatprep.subr.bf16.mxu0 %v988
        %1314 = vmatpush1.bf16.msra.mxu0 %v987
        %1315 = vmatprep.subr.bf16.mxu0 %v992
        %1316 = vmatpush1.bf16.msra.mxu0 %v991
        %1317 = vmatprep.subr.bf16.mxu0 %v996
        %1318 = vmatpush1.bf16.msra.mxu0 %v995
        %1319 = vmatprep.subr.bf16.mxu0 %v1000
        %1320 = vmatpush1.bf16.msra.mxu0 %v999
        %1321 = vmatprep.subr.bf16.mxu0 %v1004
        %1322 = vmatpush1.bf16.msra.mxu0 %v1003
        %1323 = vmatprep.subr.bf16.mxu0 %v1008
        %1324 = vmatpush1.bf16.msra.mxu0 %v1007
        %1325 = vmatprep.subr.bf16.mxu0 %v1012
        %1326 = vmatpush1.bf16.msra.mxu0 %v1011
        %1327 = vmatprep.subr.bf16.mxu0 %v1016
        %1328 = vmatpush1.bf16.msra.mxu0 %v1015
        %1329 = vmatprep.subr.bf16.mxu0 %v1020
        %1330 = vmatpush1.bf16.msra.mxu0 %v1019
        %1331 = vmatprep.subr.bf16.mxu0 %v1024
        %1332 = vmatpush1.bf16.msra.mxu0 %v1023
        %1333 = vmatprep.subr.bf16.mxu0 %v1028
        %1334 = vmatpush1.bf16.msra.mxu0 %v1027
        %1335 = vmatprep.mubr.bf16.mxu0 %v557
        %1336 = vmatmul.mubr.bf16.gmra.mrb[0].mxu0 %v556
        %v1337 = vpop.f32.mrb[0].mxu0
        %v1338 = vadd.f32 %v572, %v1337
        %v1339 = vpop.f32.mrb[0].mxu0
        %v1340 = vadd.f32 %v576, %v1339
        %v1341 = vpop.f32.mrb[0].mxu0
        %v1342 = vpop.f32.mrb[0].mxu0
        %1343 = vdwg.mxu0
        %1344 = vmatprep.subr.bf16.mxu0 %v1032
        %1345 = vmatpush1.bf16.msra.mxu0 %v1031
        %1346 = vmatprep.subr.bf16.mxu0 %v1036
        %1347 = vmatpush1.bf16.msra.mxu0 %v1035
        %1348 = vmatprep.subr.bf16.mxu0 %v1040
        %1349 = vmatpush1.bf16.msra.mxu0 %v1039
        %1350 = vmatprep.subr.bf16.mxu0 %v1044
        %1351 = vmatpush1.bf16.msra.mxu0 %v1043
        %1352 = vmatprep.subr.bf16.mxu0 %v1048
        %1353 = vmatpush1.bf16.msra.mxu0 %v1047
        %1354 = vmatprep.subr.bf16.mxu0 %v1052
        %1355 = vmatpush1.bf16.msra.mxu0 %v1051
        %1356 = vmatprep.subr.bf16.mxu0 %v1056
        %1357 = vmatpush1.bf16.msra.mxu0 %v1055
        %1358 = vmatprep.subr.bf16.mxu0 %v1060
        %1359 = vmatpush1.bf16.msra.mxu0 %v1059
        %1360 = vmatprep.subr.bf16.mxu0 %v1064
        %1361 = vmatpush1.bf16.msra.mxu0 %v1063
        %1362 = vmatprep.subr.bf16.mxu0 %v1068
        %1363 = vmatpush1.bf16.msra.mxu0 %v1067
        %1364 = vmatprep.subr.bf16.mxu0 %v1072
        %1365 = vmatpush1.bf16.msra.mxu0 %v1071
        %1366 = vmatprep.subr.bf16.mxu0 %v1076
        %1367 = vmatpush1.bf16.msra.mxu0 %v1075
        %1368 = vmatprep.subr.bf16.mxu0 %v1080
        %1369 = vmatpush1.bf16.msra.mxu0 %v1079
        %1370 = vmatprep.subr.bf16.mxu0 %v1084
        %1371 = vmatpush1.bf16.msra.mxu0 %v1083
        %1372 = vmatprep.subr.bf16.mxu0 %v1088
        %1373 = vmatpush1.bf16.msra.mxu0 %v1087
        %1374 = vmatprep.subr.bf16.mxu0 %v1092
        %1375 = vmatpush1.bf16.msra.mxu0 %v1091
        %1376 = vmatprep.mubr.bf16.mxu0 %v559
        %1377 = vmatmul.mubr.bf16.gmra.mrb[0].mxu0 %v558
        %v1378 = vpop.f32.mrb[0].mxu0
        %v1379 = vadd.f32 %v1338, %v1378
        %v1380 = vpop.f32.mrb[0].mxu0
        %v1381 = vadd.f32 %v1340, %v1380
        %v1382 = vpop.f32.mrb[0].mxu0
        %v1383 = vpop.f32.mrb[0].mxu0
        %1384 = vdwg.mxu0
        %v1385 = vmax.f32 %v1297, 0.0
        %v1386 = vmax.f32 %v1299, 0.0
        %v1387 = vmax.f32 %v1379, 0.0
        %v1388 = vmax.f32 %v1381, 0.0
        %v1389 = vld [vmem:[%s417] sm:$0xff]
        %v1390 = vld [vmem:[%s417 + $0x8] sm:$0xff]
        %v1391 = vld [vmem:[%s417 + $0x10] sm:$0xff]
        %v1392 = vld [vmem:[%s417 + $0x18] sm:$0xff]
        %v1393 = vpack.c.bf16 %v1389, %v1389
        %v1394 = vpack.c.bf16 %v1390, %v1390
        %v1395 = vpack.c.bf16 %v1391, %v1391
        %v1396 = vpack.c.bf16 %v1392, %v1392
        %1397 = vmatprep.subr.bf16.mxu0 %v966
        %1398 = vmatpush1.bf16.msra.mxu0 %v965
        %1399 = vmatprep.subr.bf16.mxu0 %v970
        %1400 = vmatpush1.bf16.msra.mxu0 %v969
        %1401 = vmatprep.subr.bf16.mxu0 %v974
        %1402 = vmatpush1.bf16.msra.mxu0 %v973
        %1403 = vmatprep.subr.bf16.mxu0 %v978
        %1404 = vmatpush1.bf16.msra.mxu0 %v977
        %1405 = vmatprep.subr.bf16.mxu0 %v982
        %1406 = vmatpush1.bf16.msra.mxu0 %v981
        %1407 = vmatprep.subr.bf16.mxu0 %v986
        %1408 = vmatpush1.bf16.msra.mxu0 %v985
        %1409 = vmatprep.subr.bf16.mxu0 %v990
        %1410 = vmatpush1.bf16.msra.mxu0 %v989
        %1411 = vmatprep.subr.bf16.mxu0 %v994
        %1412 = vmatpush1.bf16.msra.mxu0 %v993
        %1413 = vmatprep.subr.bf16.mxu0 %v998
        %1414 = vmatpush1.bf16.msra.mxu0 %v997
        %1415 = vmatprep.subr.bf16.mxu0 %v1002
        %1416 = vmatpush1.bf16.msra.mxu0 %v1001
        %1417 = vmatprep.subr.bf16.mxu0 %v1006
        %1418 = vmatpush1.bf16.msra.mxu0 %v1005
        %1419 = vmatprep.subr.bf16.mxu0 %v1010
        %1420 = vmatpush1.bf16.msra.mxu0 %v1009
        %1421 = vmatprep.subr.bf16.mxu0 %v1014
        %1422 = vmatpush1.bf16.msra.mxu0 %v1013
        %1423 = vmatprep.subr.bf16.mxu0 %v1018
        %1424 = vmatpush1.bf16.msra.mxu0 %v1017
        %1425 = vmatprep.subr.bf16.mxu0 %v1022
        %1426 = vmatpush1.bf16.msra.mxu0 %v1021
        %1427 = vmatprep.subr.bf16.mxu0 %v1026
        %1428 = vmatpush1.bf16.msra.mxu0 %v1025
        %1429 = vmatprep.mubr.bf16.mxu0 %v1394
        %1430 = vmatmul.mubr.bf16.gmra.mrb[0].mxu0 %v1393
        %v1431 = vpop.f32.mrb[0].mxu0
        %v1432 = vadd.f32 %v564, %v1431
        %v1433 = vpop.f32.mrb[0].mxu0
        %v1434 = vadd.f32 %v568, %v1433
        %v1435 = vpop.f32.mrb[0].mxu0
        %v1436 = vpop.f32.mrb[0].mxu0
        %1437 = vdwg.mxu0
        %1438 = vmatprep.subr.bf16.mxu0 %v1030
        %1439 = vmatpush1.bf16.msra.mxu0 %v1029
        %1440 = vmatprep.subr.bf16.mxu0 %v1034
        %1441 = vmatpush1.bf16.msra.mxu0 %v1033
        %1442 = vmatprep.subr.bf16.mxu0 %v1038
        %1443 = vmatpush1.bf16.msra.mxu0 %v1037
        %1444 = vmatprep.subr.bf16.mxu0 %v1042
        %1445 = vmatpush1.bf16.msra.mxu0 %v1041
        %1446 = vmatprep.subr.bf16.mxu0 %v1046
        %1447 = vmatpush1.bf16.msra.mxu0 %v1045
        %1448 = vmatprep.subr.bf16.mxu0 %v1050
        %1449 = vmatpush1.bf16.msra.mxu0 %v1049
        %1450 = vmatprep.subr.bf16.mxu0 %v1054
        %1451 = vmatpush1.bf16.msra.mxu0 %v1053
        %1452 = vmatprep.subr.bf16.mxu0 %v1058
        %1453 = vmatpush1.bf16.msra.mxu0 %v1057
        %1454 = vmatprep.subr.bf16.mxu0 %v1062
        %1455 = vmatpush1.bf16.msra.mxu0 %v1061
        %1456 = vmatprep.subr.bf16.mxu0 %v1066
        %1457 = vmatpush1.bf16.msra.mxu0 %v1065
        %1458 = vmatprep.subr.bf16.mxu0 %v1070
        %1459 = vmatpush1.bf16.msra.mxu0 %v1069
        %1460 = vmatprep.subr.bf16.mxu0 %v1074
        %1461 = vmatpush1.bf16.msra.mxu0 %v1073
        %1462 = vmatprep.subr.bf16.mxu0 %v1078
        %1463 = vmatpush1.bf16.msra.mxu0 %v1077
        %1464 = vmatprep.subr.bf16.mxu0 %v1082
        %1465 = vmatpush1.bf16.msra.mxu0 %v1081
        %1466 = vmatprep.subr.bf16.mxu0 %v1086
        %1467 = vmatpush1.bf16.msra.mxu0 %v1085
        %1468 = vmatprep.subr.bf16.mxu0 %v1090
        %1469 = vmatpush1.bf16.msra.mxu0 %v1089
        %1470 = vmatprep.mubr.bf16.mxu0 %v1396
        %1471 = vmatmul.mubr.bf16.gmra.mrb[0].mxu0 %v1395
        %v1472 = vpop.f32.mrb[0].mxu0
        %v1473 = vadd.f32 %v1432, %v1472
        %v1474 = vpop.f32.mrb[0].mxu0
        %v1475 = vadd.f32 %v1434, %v1474
        %v1476 = vpop.f32.mrb[0].mxu0
        %v1477 = vpop.f32.mrb[0].mxu0
        %1478 = vdwg.mxu0
        %1479 = vmatprep.subr.bf16.mxu0 %v968
        %1480 = vmatpush1.bf16.msra.mxu0 %v967
        %1481 = vmatprep.subr.bf16.mxu0 %v972
        %1482 = vmatpush1.bf16.msra.mxu0 %v971
        %1483 = vmatprep.subr.bf16.mxu0 %v976
        %1484 = vmatpush1.bf16.msra.mxu0 %v975
        %1485 = vmatprep.subr.bf16.mxu0 %v980
        %1486 = vmatpush1.bf16.msra.mxu0 %v979
        %1487 = vmatprep.subr.bf16.mxu0 %v984
        %1488 = vmatpush1.bf16.msra.mxu0 %v983
        %1489 = vmatprep.subr.bf16.mxu0 %v988
        %1490 = vmatpush1.bf16.msra.mxu0 %v987
        %1491 = vmatprep.subr.bf16.mxu0 %v992
        %1492 = vmatpush1.bf16.msra.mxu0 %v991
        %1493 = vmatprep.subr.bf16.mxu0 %v996
        %1494 = vmatpush1.bf16.msra.mxu0 %v995
        %1495 = vmatprep.subr.bf16.mxu0 %v1000
        %1496 = vmatpush1.bf16.msra.mxu0 %v999
        %1497 = vmatprep.subr.bf16.mxu0 %v1004
        %1498 = vmatpush1.bf16.msra.mxu0 %v1003
        %1499 = vmatprep.subr.bf16.mxu0 %v1008
        %1500 = vmatpush1.bf16.msra.mxu0 %v1007
        %1501 = vmatprep.subr.bf16.mxu0 %v1012
        %1502 = vmatpush1.bf16.msra.mxu0 %v1011
        %1503 = vmatprep.subr.bf16.mxu0 %v1016
        %1504 = vmatpush1.bf16.msra.mxu0 %v1015
        %1505 = vmatprep.subr.bf16.mxu0 %v1020
        %1506 = vmatpush1.bf16.msra.mxu0 %v1019
        %1507 = vmatprep.subr.bf16.mxu0 %v1024
        %1508 = vmatpush1.bf16.msra.mxu0 %v1023
        %1509 = vmatprep.subr.bf16.mxu0 %v1028
        %1510 = vmatpush1.bf16.msra.mxu0 %v1027
        %1511 = vmatprep.mubr.bf16.mxu0 %v1394
        %1512 = vmatmul.mubr.bf16.gmra.mrb[0].mxu0 %v1393
        %v1513 = vpop.f32.mrb[0].mxu0
        %v1514 = vadd.f32 %v572, %v1513
        %v1515 = vpop.f32.mrb[0].mxu0
        %v1516 = vadd.f32 %v576, %v1515
        %v1517 = vpop.f32.mrb[0].mxu0
        %v1518 = vpop.f32.mrb[0].mxu0
        %1519 = vdwg.mxu0
        %1520 = vmatprep.subr.bf16.mxu0 %v1032
        %1521 = vmatpush1.bf16.msra.mxu0 %v1031
        %1522 = vmatprep.subr.bf16.mxu0 %v1036
        %1523 = vmatpush1.bf16.msra.mxu0 %v1035
        %1524 = vmatprep.subr.bf16.mxu0 %v1040
        %1525 = vmatpush1.bf16.msra.mxu0 %v1039
        %1526 = vmatprep.subr.bf16.mxu0 %v1044
        %1527 = vmatpush1.bf16.msra.mxu0 %v1043
        %1528 = vmatprep.subr.bf16.mxu0 %v1048
        %1529 = vmatpush1.bf16.msra.mxu0 %v1047
        %1530 = vmatprep.subr.bf16.mxu0 %v1052
        %1531 = vmatpush1.bf16.msra.mxu0 %v1051
        %1532 = vmatprep.subr.bf16.mxu0 %v1056
        %1533 = vmatpush1.bf16.msra.mxu0 %v1055
        %1534 = vmatprep.subr.bf16.mxu0 %v1060
        %1535 = vmatpush1.bf16.msra.mxu0 %v1059
        %1536 = vmatprep.subr.bf16.mxu0 %v1064
        %1537 = vmatpush1.bf16.msra.mxu0 %v1063
        %1538 = vmatprep.subr.bf16.mxu0 %v1068
        %1539 = vmatpush1.bf16.msra.mxu0 %v1067
        %1540 = vmatprep.subr.bf16.mxu0 %v1072
        %1541 = vmatpush1.bf16.msra.mxu0 %v1071
        %1542 = vmatprep.subr.bf16.mxu0 %v1076
        %1543 = vmatpush1.bf16.msra.mxu0 %v1075
        %1544 = vmatprep.subr.bf16.mxu0 %v1080
        %1545 = vmatpush1.bf16.msra.mxu0 %v1079
        %1546 = vmatprep.subr.bf16.mxu0 %v1084
        %1547 = vmatpush1.bf16.msra.mxu0 %v1083
        %1548 = vmatprep.subr.bf16.mxu0 %v1088
        %1549 = vmatpush1.bf16.msra.mxu0 %v1087
        %1550 = vmatprep.subr.bf16.mxu0 %v1092
        %1551 = vmatpush1.bf16.msra.mxu0 %v1091
        %1552 = vmatprep.mubr.bf16.mxu0 %v1396
        %1553 = vmatmul.mubr.bf16.gmra.mrb[0].mxu0 %v1395
        %v1554 = vpop.f32.mrb[0].mxu0
        %v1555 = vadd.f32 %v1514, %v1554
        %v1556 = vpop.f32.mrb[0].mxu0
        %v1557 = vadd.f32 %v1516, %v1556
        %v1558 = vpop.f32.mrb[0].mxu0
        %v1559 = vpop.f32.mrb[0].mxu0
        %1560 = vdwg.mxu0
        %v1561 = vmax.f32 %v1473, 0.0
        %v1562 = vmax.f32 %v1475, 0.0
        %v1563 = vmax.f32 %v1555, 0.0
        %v1564 = vmax.f32 %v1557, 0.0
        %v1565 = vsub.f32 %v1385, %v1561
        %v1566 = vsub.f32 %v1386, %v1562
        %v1567 = vsub.f32 %v1387, %v1563
        %v1568 = vsub.f32 %v1388, %v1564
        %v1569 = vpack.c.bf16 %v1565, %v1565
        %v1570 = vpack.c.bf16 %v1566, %v1566
        %v1571 = vpack.c.bf16 %v1567, %v1567
        %v1572 = vpack.c.bf16 %v1568, %v1568
        %v1573 = vld [vmem:[#allocation4] sm:$0xff]
        %v1574 = vld [vmem:[#allocation4 + $0x8] sm:$0xff]
        %v1575 = vld [vmem:[#allocation4 + $0x10] sm:$0xff]
        %v1576 = vld [vmem:[#allocation4 + $0x18] sm:$0xff]
        %v1577 = vld [vmem:[#allocation4 + $0x20] sm:$0xff]
        %v1578 = vld [vmem:[#allocation4 + $0x28] sm:$0xff]
        %v1579 = vld [vmem:[#allocation4 + $0x30] sm:$0xff]
        %v1580 = vld [vmem:[#allocation4 + $0x38] sm:$0xff]
        %v1581 = vld [vmem:[#allocation4 + $0x40] sm:$0xff]
        %v1582 = vld [vmem:[#allocation4 + $0x48] sm:$0xff]
        %v1583 = vld [vmem:[#allocation4 + $0x50] sm:$0xff]
        %v1584 = vld [vmem:[#allocation4 + $0x58] sm:$0xff]
        %v1585 = vld [vmem:[#allocation4 + $0x60] sm:$0xff]
        %v1586 = vld [vmem:[#allocation4 + $0x68] sm:$0xff]
        %v1587 = vld [vmem:[#allocation4 + $0x70] sm:$0xff]
        %v1588 = vld [vmem:[#allocation4 + $0x78] sm:$0xff]
        %v1589 = vld [vmem:[#allocation4 + $0x80] sm:$0xff]
        %v1590 = vld [vmem:[#allocation4 + $0x88] sm:$0xff]
        %v1591 = vld [vmem:[#allocation4 + $0x90] sm:$0xff]
        %v1592 = vld [vmem:[#allocation4 + $0x98] sm:$0xff]
        %v1593 = vld [vmem:[#allocation4 + $0xa0] sm:$0xff]
        %v1594 = vld [vmem:[#allocation4 + $0xa8] sm:$0xff]
        %v1595 = vld [vmem:[#allocation4 + $0xb0] sm:$0xff]
        %v1596 = vld [vmem:[#allocation4 + $0xb8] sm:$0xff]
        %v1597 = vld [vmem:[#allocation4 + $0xc0] sm:$0xff]
        %v1598 = vld [vmem:[#allocation4 + $0xc8] sm:$0xff]
        %v1599 = vld [vmem:[#allocation4 + $0xd0] sm:$0xff]
        %v1600 = vld [vmem:[#allocation4 + $0xd8] sm:$0xff]
        %v1601 = vld [vmem:[#allocation4 + $0xe0] sm:$0xff]
        %v1602 = vld [vmem:[#allocation4 + $0xe8] sm:$0xff]
        %v1603 = vld [vmem:[#allocation4 + $0xf0] sm:$0xff]
        %v1604 = vld [vmem:[#allocation4 + $0xf8] sm:$0xff]
        %v1605 = vld [vmem:[#allocation4 + $0x100] sm:$0xff]
        %v1606 = vld [vmem:[#allocation4 + $0x108] sm:$0xff]
        %v1607 = vld [vmem:[#allocation4 + $0x110] sm:$0xff]
        %v1608 = vld [vmem:[#allocation4 + $0x118] sm:$0xff]
        %v1609 = vld [vmem:[#allocation4 + $0x120] sm:$0xff]
        %v1610 = vld [vmem:[#allocation4 + $0x128] sm:$0xff]
        %v1611 = vld [vmem:[#allocation4 + $0x130] sm:$0xff]
        %v1612 = vld [vmem:[#allocation4 + $0x138] sm:$0xff]
        %v1613 = vld [vmem:[#allocation4 + $0x140] sm:$0xff]
        %v1614 = vld [vmem:[#allocation4 + $0x148] sm:$0xff]
        %v1615 = vld [vmem:[#allocation4 + $0x150] sm:$0xff]
        %v1616 = vld [vmem:[#allocation4 + $0x158] sm:$0xff]
        %v1617 = vld [vmem:[#allocation4 + $0x160] sm:$0xff]
        %v1618 = vld [vmem:[#allocation4 + $0x168] sm:$0xff]
        %v1619 = vld [vmem:[#allocation4 + $0x170] sm:$0xff]
        %v1620 = vld [vmem:[#allocation4 + $0x178] sm:$0xff]
        %v1621 = vld [vmem:[#allocation4 + $0x180] sm:$0xff]
        %v1622 = vld [vmem:[#allocation4 + $0x188] sm:$0xff]
        %v1623 = vld [vmem:[#allocation4 + $0x190] sm:$0xff]
        %v1624 = vld [vmem:[#allocation4 + $0x198] sm:$0xff]
        %v1625 = vld [vmem:[#allocation4 + $0x1a0] sm:$0xff]
        %v1626 = vld [vmem:[#allocation4 + $0x1a8] sm:$0xff]
        %v1627 = vld [vmem:[#allocation4 + $0x1b0] sm:$0xff]
        %v1628 = vld [vmem:[#allocation4 + $0x1b8] sm:$0xff]
        %v1629 = vld [vmem:[#allocation4 + $0x1c0] sm:$0xff]
        %v1630 = vld [vmem:[#allocation4 + $0x1c8] sm:$0xff]
        %v1631 = vld [vmem:[#allocation4 + $0x1d0] sm:$0xff]
        %v1632 = vld [vmem:[#allocation4 + $0x1d8] sm:$0xff]
        %v1633 = vld [vmem:[#allocation4 + $0x1e0] sm:$0xff]
        %v1634 = vld [vmem:[#allocation4 + $0x1e8] sm:$0xff]
        %v1635 = vld [vmem:[#allocation4 + $0x1f0] sm:$0xff]
        %v1636 = vld [vmem:[#allocation4 + $0x1f8] sm:$0xff]
        %v1637 = vld [vmem:[#allocation4 + $0x200] sm:$0xff]
        %v1638 = vld [vmem:[#allocation4 + $0x208] sm:$0xff]
        %v1639 = vld [vmem:[#allocation4 + $0x210] sm:$0xff]
        %v1640 = vld [vmem:[#allocation4 + $0x218] sm:$0xff]
        %v1641 = vld [vmem:[#allocation4 + $0x220] sm:$0xff]
        %v1642 = vld [vmem:[#allocation4 + $0x228] sm:$0xff]
        %v1643 = vld [vmem:[#allocation4 + $0x230] sm:$0xff]
        %v1644 = vld [vmem:[#allocation4 + $0x238] sm:$0xff]
        %v1645 = vld [vmem:[#allocation4 + $0x240] sm:$0xff]
        %v1646 = vld [vmem:[#allocation4 + $0x248] sm:$0xff]
        %v1647 = vld [vmem:[#allocation4 + $0x250] sm:$0xff]
        %v1648 = vld [vmem:[#allocation4 + $0x258] sm:$0xff]
        %v1649 = vld [vmem:[#allocation4 + $0x260] sm:$0xff]
        %v1650 = vld [vmem:[#allocation4 + $0x268] sm:$0xff]
        %v1651 = vld [vmem:[#allocation4 + $0x270] sm:$0xff]
        %v1652 = vld [vmem:[#allocation4 + $0x278] sm:$0xff]
        %v1653 = vld [vmem:[#allocation4 + $0x280] sm:$0xff]
        %v1654 = vld [vmem:[#allocation4 + $0x288] sm:$0xff]
        %v1655 = vld [vmem:[#allocation4 + $0x290] sm:$0xff]
        %v1656 = vld [vmem:[#allocation4 + $0x298] sm:$0xff]
        %v1657 = vld [vmem:[#allocation4 + $0x2a0] sm:$0xff]
        %v1658 = vld [vmem:[#allocation4 + $0x2a8] sm:$0xff]
        %v1659 = vld [vmem:[#allocation4 + $0x2b0] sm:$0xff]
        %v1660 = vld [vmem:[#allocation4 + $0x2b8] sm:$0xff]
        %v1661 = vld [vmem:[#allocation4 + $0x2c0] sm:$0xff]
        %v1662 = vld [vmem:[#allocation4 + $0x2c8] sm:$0xff]
        %v1663 = vld [vmem:[#allocation4 + $0x2d0] sm:$0xff]
        %v1664 = vld [vmem:[#allocation4 + $0x2d8] sm:$0xff]
        %v1665 = vld [vmem:[#allocation4 + $0x2e0] sm:$0xff]
        %v1666 = vld [vmem:[#allocation4 + $0x2e8] sm:$0xff]
        %v1667 = vld [vmem:[#allocation4 + $0x2f0] sm:$0xff]
        %v1668 = vld [vmem:[#allocation4 + $0x2f8] sm:$0xff]
        %v1669 = vld [vmem:[#allocation4 + $0x300] sm:$0xff]
        %v1670 = vld [vmem:[#allocation4 + $0x308] sm:$0xff]
        %v1671 = vld [vmem:[#allocation4 + $0x310] sm:$0xff]
        %v1672 = vld [vmem:[#allocation4 + $0x318] sm:$0xff]
        %v1673 = vld [vmem:[#allocation4 + $0x320] sm:$0xff]
        %v1674 = vld [vmem:[#allocation4 + $0x328] sm:$0xff]
        %v1675 = vld [vmem:[#allocation4 + $0x330] sm:$0xff]
        %v1676 = vld [vmem:[#allocation4 + $0x338] sm:$0xff]
        %v1677 = vld [vmem:[#allocation4 + $0x340] sm:$0xff]
        %v1678 = vld [vmem:[#allocation4 + $0x348] sm:$0xff]
        %v1679 = vld [vmem:[#allocation4 + $0x350] sm:$0xff]
        %v1680 = vld [vmem:[#allocation4 + $0x358] sm:$0xff]
        %v1681 = vld [vmem:[#allocation4 + $0x360] sm:$0xff]
        %v1682 = vld [vmem:[#allocation4 + $0x368] sm:$0xff]
        %v1683 = vld [vmem:[#allocation4 + $0x370] sm:$0xff]
        %v1684 = vld [vmem:[#allocation4 + $0x378] sm:$0xff]
        %v1685 = vld [vmem:[#allocation4 + $0x380] sm:$0xff]
        %v1686 = vld [vmem:[#allocation4 + $0x388] sm:$0xff]
        %v1687 = vld [vmem:[#allocation4 + $0x390] sm:$0xff]
        %v1688 = vld [vmem:[#allocation4 + $0x398] sm:$0xff]
        %v1689 = vld [vmem:[#allocation4 + $0x3a0] sm:$0xff]
        %v1690 = vld [vmem:[#allocation4 + $0x3a8] sm:$0xff]
        %v1691 = vld [vmem:[#allocation4 + $0x3b0] sm:$0xff]
        %v1692 = vld [vmem:[#allocation4 + $0x3b8] sm:$0xff]
        %v1693 = vld [vmem:[#allocation4 + $0x3c0] sm:$0xff]
        %v1694 = vld [vmem:[#allocation4 + $0x3c8] sm:$0xff]
        %v1695 = vld [vmem:[#allocation4 + $0x3d0] sm:$0xff]
        %v1696 = vld [vmem:[#allocation4 + $0x3d8] sm:$0xff]
        %v1697 = vld [vmem:[#allocation4 + $0x3e0] sm:$0xff]
        %v1698 = vld [vmem:[#allocation4 + $0x3e8] sm:$0xff]
        %v1699 = vld [vmem:[#allocation4 + $0x3f0] sm:$0xff]
        %v1700 = vld [vmem:[#allocation4 + $0x3f8] sm:$0xff]
        %v1701 = vld [vmem:[%s5] sm:$0xf]
        %v1703 = vlaneseq
        %v1704 = vshrl.u32 %v1703, 7
        %v1705 = vsub.s32 0, %v1704
        %v1706 = vrot.slane %v1701, %v1705
        %v1707 = vlaneseq
        %v1708 = vshrl.u32 %v1707, 7
        %v1709 = vsub.s32 1, %v1708
        %v1710 = vrot.slane %v1701, %v1709
        %v1711 = vlaneseq
        %v1712 = vshrl.u32 %v1711, 7
        %v1713 = vsub.s32 2, %v1712
        %v1714 = vrot.slane %v1701, %v1713
        %v1715 = vlaneseq
        %v1716 = vshrl.u32 %v1715, 7
        %v1717 = vsub.s32 3, %v1716
        %v1718 = vrot.slane %v1701, %v1717
        %v1851 = vunpack.c.l.b16 %v1573
        %v1852 = vunpack.c.h.b16 %v1573
        %v1853 = vunpack.c.l.b16 %v1574
        %v1854 = vunpack.c.h.b16 %v1574
        %v1855 = vunpack.c.l.b16 %v1575
        %v1856 = vunpack.c.h.b16 %v1575
        %v1857 = vunpack.c.l.b16 %v1576
        %v1858 = vunpack.c.h.b16 %v1576
        %v1859 = vunpack.c.l.b16 %v1577
        %v1860 = vunpack.c.h.b16 %v1577
        %v1861 = vunpack.c.l.b16 %v1578
        %v1862 = vunpack.c.h.b16 %v1578
        %v1863 = vunpack.c.l.b16 %v1579
        %v1864 = vunpack.c.h.b16 %v1579
        %v1865 = vunpack.c.l.b16 %v1580
        %v1866 = vunpack.c.h.b16 %v1580
        %v1867 = vunpack.c.l.b16 %v1581
        %v1868 = vunpack.c.h.b16 %v1581
        %v1869 = vunpack.c.l.b16 %v1582
        %v1870 = vunpack.c.h.b16 %v1582
        %v1871 = vunpack.c.l.b16 %v1583
        %v1872 = vunpack.c.h.b16 %v1583
        %v1873 = vunpack.c.l.b16 %v1584
        %v1874 = vunpack.c.h.b16 %v1584
        %v1875 = vunpack.c.l.b16 %v1585
        %v1876 = vunpack.c.h.b16 %v1585
        %v1877 = vunpack.c.l.b16 %v1586
        %v1878 = vunpack.c.h.b16 %v1586
        %v1879 = vunpack.c.l.b16 %v1587
        %v1880 = vunpack.c.h.b16 %v1587
        %v1881 = vunpack.c.l.b16 %v1588
        %v1882 = vunpack.c.h.b16 %v1588
        %v1883 = vunpack.c.l.b16 %v1589
        %v1884 = vunpack.c.h.b16 %v1589
        %v1885 = vunpack.c.l.b16 %v1590
        %v1886 = vunpack.c.h.b16 %v1590
        %v1887 = vunpack.c.l.b16 %v1591
        %v1888 = vunpack.c.h.b16 %v1591
        %v1889 = vunpack.c.l.b16 %v1592
        %v1890 = vunpack.c.h.b16 %v1592
        %v1891 = vunpack.c.l.b16 %v1593
        %v1892 = vunpack.c.h.b16 %v1593
        %v1893 = vunpack.c.l.b16 %v1594
        %v1894 = vunpack.c.h.b16 %v1594
        %v1895 = vunpack.c.l.b16 %v1595
        %v1896 = vunpack.c.h.b16 %v1595
        %v1897 = vunpack.c.l.b16 %v1596
        %v1898 = vunpack.c.h.b16 %v1596
        %v1899 = vunpack.c.l.b16 %v1597
        %v1900 = vunpack.c.h.b16 %v1597
        %v1901 = vunpack.c.l.b16 %v1598
        %v1902 = vunpack.c.h.b16 %v1598
        %v1903 = vunpack.c.l.b16 %v1599
        %v1904 = vunpack.c.h.b16 %v1599
        %v1905 = vunpack.c.l.b16 %v1600
        %v1906 = vunpack.c.h.b16 %v1600
        %v1907 = vunpack.c.l.b16 %v1601
        %v1908 = vunpack.c.h.b16 %v1601
        %v1909 = vunpack.c.l.b16 %v1602
        %v1910 = vunpack.c.h.b16 %v1602
        %v1911 = vunpack.c.l.b16 %v1603
        %v1912 = vunpack.c.h.b16 %v1603
        %v1913 = vunpack.c.l.b16 %v1604
        %v1914 = vunpack.c.h.b16 %v1604
        %v1915 = vunpack.c.l.b16 %v1605
        %v1916 = vunpack.c.h.b16 %v1605
        %v1917 = vunpack.c.l.b16 %v1606
        %v1918 = vunpack.c.h.b16 %v1606
        %v1919 = vunpack.c.l.b16 %v1607
        %v1920 = vunpack.c.h.b16 %v1607
        %v1921 = vunpack.c.l.b16 %v1608
        %v1922 = vunpack.c.h.b16 %v1608
        %v1923 = vunpack.c.l.b16 %v1609
        %v1924 = vunpack.c.h.b16 %v1609
        %v1925 = vunpack.c.l.b16 %v1610
        %v1926 = vunpack.c.h.b16 %v1610
        %v1927 = vunpack.c.l.b16 %v1611
        %v1928 = vunpack.c.h.b16 %v1611
        %v1929 = vunpack.c.l.b16 %v1612
        %v1930 = vunpack.c.h.b16 %v1612
        %v1931 = vunpack.c.l.b16 %v1613
        %v1932 = vunpack.c.h.b16 %v1613
        %v1933 = vunpack.c.l.b16 %v1614
        %v1934 = vunpack.c.h.b16 %v1614
        %v1935 = vunpack.c.l.b16 %v1615
        %v1936 = vunpack.c.h.b16 %v1615
        %v1937 = vunpack.c.l.b16 %v1616
        %v1938 = vunpack.c.h.b16 %v1616
        %v1939 = vunpack.c.l.b16 %v1617
        %v1940 = vunpack.c.h.b16 %v1617
        %v1941 = vunpack.c.l.b16 %v1618
        %v1942 = vunpack.c.h.b16 %v1618
        %v1943 = vunpack.c.l.b16 %v1619
        %v1944 = vunpack.c.h.b16 %v1619
        %v1945 = vunpack.c.l.b16 %v1620
        %v1946 = vunpack.c.h.b16 %v1620
        %v1947 = vunpack.c.l.b16 %v1621
        %v1948 = vunpack.c.h.b16 %v1621
        %v1949 = vunpack.c.l.b16 %v1622
        %v1950 = vunpack.c.h.b16 %v1622
        %v1951 = vunpack.c.l.b16 %v1623
        %v1952 = vunpack.c.h.b16 %v1623
        %v1953 = vunpack.c.l.b16 %v1624
        %v1954 = vunpack.c.h.b16 %v1624
        %v1955 = vunpack.c.l.b16 %v1625
        %v1956 = vunpack.c.h.b16 %v1625
        %v1957 = vunpack.c.l.b16 %v1626
        %v1958 = vunpack.c.h.b16 %v1626
        %v1959 = vunpack.c.l.b16 %v1627
        %v1960 = vunpack.c.h.b16 %v1627
        %v1961 = vunpack.c.l.b16 %v1628
        %v1962 = vunpack.c.h.b16 %v1628
        %v1963 = vunpack.c.l.b16 %v1629
        %v1964 = vunpack.c.h.b16 %v1629
        %v1965 = vunpack.c.l.b16 %v1630
        %v1966 = vunpack.c.h.b16 %v1630
        %v1967 = vunpack.c.l.b16 %v1631
        %v1968 = vunpack.c.h.b16 %v1631
        %v1969 = vunpack.c.l.b16 %v1632
        %v1970 = vunpack.c.h.b16 %v1632
        %v1971 = vunpack.c.l.b16 %v1633
        %v1972 = vunpack.c.h.b16 %v1633
        %v1973 = vunpack.c.l.b16 %v1634
        %v1974 = vunpack.c.h.b16 %v1634
        %v1975 = vunpack.c.l.b16 %v1635
        %v1976 = vunpack.c.h.b16 %v1635
        %v1977 = vunpack.c.l.b16 %v1636
        %v1978 = vunpack.c.h.b16 %v1636
        %v1979 = vunpack.c.l.b16 %v1637
        %v1980 = vunpack.c.h.b16 %v1637
        %v1981 = vunpack.c.l.b16 %v1638
        %v1982 = vunpack.c.h.b16 %v1638
        %v1983 = vunpack.c.l.b16 %v1639
        %v1984 = vunpack.c.h.b16 %v1639
        %v1985 = vunpack.c.l.b16 %v1640
        %v1986 = vunpack.c.h.b16 %v1640
        %v1987 = vunpack.c.l.b16 %v1641
        %v1988 = vunpack.c.h.b16 %v1641
        %v1989 = vunpack.c.l.b16 %v1642
        %v1990 = vunpack.c.h.b16 %v1642
        %v1991 = vunpack.c.l.b16 %v1643
        %v1992 = vunpack.c.h.b16 %v1643
        %v1993 = vunpack.c.l.b16 %v1644
        %v1994 = vunpack.c.h.b16 %v1644
        %v1995 = vunpack.c.l.b16 %v1645
        %v1996 = vunpack.c.h.b16 %v1645
        %v1997 = vunpack.c.l.b16 %v1646
        %v1998 = vunpack.c.h.b16 %v1646
        %v1999 = vunpack.c.l.b16 %v1647
        %v2000 = vunpack.c.h.b16 %v1647
        %v2001 = vunpack.c.l.b16 %v1648
        %v2002 = vunpack.c.h.b16 %v1648
        %v2003 = vunpack.c.l.b16 %v1649
        %v2004 = vunpack.c.h.b16 %v1649
        %v2005 = vunpack.c.l.b16 %v1650
        %v2006 = vunpack.c.h.b16 %v1650
        %v2007 = vunpack.c.l.b16 %v1651
        %v2008 = vunpack.c.h.b16 %v1651
        %v2009 = vunpack.c.l.b16 %v1652
        %v2010 = vunpack.c.h.b16 %v1652
        %v2011 = vunpack.c.l.b16 %v1653
        %v2012 = vunpack.c.h.b16 %v1653
        %v2013 = vunpack.c.l.b16 %v1654
        %v2014 = vunpack.c.h.b16 %v1654
        %v2015 = vunpack.c.l.b16 %v1655
        %v2016 = vunpack.c.h.b16 %v1655
        %v2017 = vunpack.c.l.b16 %v1656
        %v2018 = vunpack.c.h.b16 %v1656
        %v2019 = vunpack.c.l.b16 %v1657
        %v2020 = vunpack.c.h.b16 %v1657
        %v2021 = vunpack.c.l.b16 %v1658
        %v2022 = vunpack.c.h.b16 %v1658
        %v2023 = vunpack.c.l.b16 %v1659
        %v2024 = vunpack.c.h.b16 %v1659
        %v2025 = vunpack.c.l.b16 %v1660
        %v2026 = vunpack.c.h.b16 %v1660
        %v2027 = vunpack.c.l.b16 %v1661
        %v2028 = vunpack.c.h.b16 %v1661
        %v2029 = vunpack.c.l.b16 %v1662
        %v2030 = vunpack.c.h.b16 %v1662
        %v2031 = vunpack.c.l.b16 %v1663
        %v2032 = vunpack.c.h.b16 %v1663
        %v2033 = vunpack.c.l.b16 %v1664
        %v2034 = vunpack.c.h.b16 %v1664
        %v2035 = vunpack.c.l.b16 %v1665
        %v2036 = vunpack.c.h.b16 %v1665
        %v2037 = vunpack.c.l.b16 %v1666
        %v2038 = vunpack.c.h.b16 %v1666
        %v2039 = vunpack.c.l.b16 %v1667
        %v2040 = vunpack.c.h.b16 %v1667
        %v2041 = vunpack.c.l.b16 %v1668
        %v2042 = vunpack.c.h.b16 %v1668
        %v2043 = vunpack.c.l.b16 %v1669
        %v2044 = vunpack.c.h.b16 %v1669
        %v2045 = vunpack.c.l.b16 %v1670
        %v2046 = vunpack.c.h.b16 %v1670
        %v2047 = vunpack.c.l.b16 %v1671
        %v2048 = vunpack.c.h.b16 %v1671
        %v2049 = vunpack.c.l.b16 %v1672
        %v2050 = vunpack.c.h.b16 %v1672
        %v2051 = vunpack.c.l.b16 %v1673
        %v2052 = vunpack.c.h.b16 %v1673
        %v2053 = vunpack.c.l.b16 %v1674
        %v2054 = vunpack.c.h.b16 %v1674
        %v2055 = vunpack.c.l.b16 %v1675
        %v2056 = vunpack.c.h.b16 %v1675
        %v2057 = vunpack.c.l.b16 %v1676
        %v2058 = vunpack.c.h.b16 %v1676
        %v2059 = vunpack.c.l.b16 %v1677
        %v2060 = vunpack.c.h.b16 %v1677
        %v2061 = vunpack.c.l.b16 %v1678
        %v2062 = vunpack.c.h.b16 %v1678
        %v2063 = vunpack.c.l.b16 %v1679
        %v2064 = vunpack.c.h.b16 %v1679
        %v2065 = vunpack.c.l.b16 %v1680
        %v2066 = vunpack.c.h.b16 %v1680
        %v2067 = vunpack.c.l.b16 %v1681
        %v2068 = vunpack.c.h.b16 %v1681
        %v2069 = vunpack.c.l.b16 %v1682
        %v2070 = vunpack.c.h.b16 %v1682
        %v2071 = vunpack.c.l.b16 %v1683
        %v2072 = vunpack.c.h.b16 %v1683
        %v2073 = vunpack.c.l.b16 %v1684
        %v2074 = vunpack.c.h.b16 %v1684
        %v2075 = vunpack.c.l.b16 %v1685
        %v2076 = vunpack.c.h.b16 %v1685
        %v2077 = vunpack.c.l.b16 %v1686
        %v2078 = vunpack.c.h.b16 %v1686
        %v2079 = vunpack.c.l.b16 %v1687
        %v2080 = vunpack.c.h.b16 %v1687
        %v2081 = vunpack.c.l.b16 %v1688
        %v2082 = vunpack.c.h.b16 %v1688
        %v2083 = vunpack.c.l.b16 %v1689
        %v2084 = vunpack.c.h.b16 %v1689
        %v2085 = vunpack.c.l.b16 %v1690
        %v2086 = vunpack.c.h.b16 %v1690
        %v2087 = vunpack.c.l.b16 %v1691
        %v2088 = vunpack.c.h.b16 %v1691
        %v2089 = vunpack.c.l.b16 %v1692
        %v2090 = vunpack.c.h.b16 %v1692
        %v2091 = vunpack.c.l.b16 %v1693
        %v2092 = vunpack.c.h.b16 %v1693
        %v2093 = vunpack.c.l.b16 %v1694
        %v2094 = vunpack.c.h.b16 %v1694
        %v2095 = vunpack.c.l.b16 %v1695
        %v2096 = vunpack.c.h.b16 %v1695
        %v2097 = vunpack.c.l.b16 %v1696
        %v2098 = vunpack.c.h.b16 %v1696
        %v2099 = vunpack.c.l.b16 %v1697
        %v2100 = vunpack.c.h.b16 %v1697
        %v2101 = vunpack.c.l.b16 %v1698
        %v2102 = vunpack.c.h.b16 %v1698
        %v2103 = vunpack.c.l.b16 %v1699
        %v2104 = vunpack.c.h.b16 %v1699
        %v2105 = vunpack.c.l.b16 %v1700
        %v2106 = vunpack.c.h.b16 %v1700
        %v2107 = vpack.c.b16 %v1855, %v1851
        %v2108 = vpack.c.b16 %v1856, %v1852
        %v2109 = vpack.c.b16 %v1857, %v1853
        %v2110 = vpack.c.b16 %v1858, %v1854
        %v2111 = vpack.c.b16 %v1863, %v1859
        %v2112 = vpack.c.b16 %v1864, %v1860
        %v2113 = vpack.c.b16 %v1865, %v1861
        %v2114 = vpack.c.b16 %v1866, %v1862
        %v2115 = vpack.c.b16 %v1871, %v1867
        %v2116 = vpack.c.b16 %v1872, %v1868
        %v2117 = vpack.c.b16 %v1873, %v1869
        %v2118 = vpack.c.b16 %v1874, %v1870
        %v2119 = vpack.c.b16 %v1879, %v1875
        %v2120 = vpack.c.b16 %v1880, %v1876
        %v2121 = vpack.c.b16 %v1881, %v1877
        %v2122 = vpack.c.b16 %v1882, %v1878
        %v2123 = vpack.c.b16 %v1887, %v1883
        %v2124 = vpack.c.b16 %v1888, %v1884
        %v2125 = vpack.c.b16 %v1889, %v1885
        %v2126 = vpack.c.b16 %v1890, %v1886
        %v2127 = vpack.c.b16 %v1895, %v1891
        %v2128 = vpack.c.b16 %v1896, %v1892
        %v2129 = vpack.c.b16 %v1897, %v1893
        %v2130 = vpack.c.b16 %v1898, %v1894
        %v2131 = vpack.c.b16 %v1903, %v1899
        %v2132 = vpack.c.b16 %v1904, %v1900
        %v2133 = vpack.c.b16 %v1905, %v1901
        %v2134 = vpack.c.b16 %v1906, %v1902
        %v2135 = vpack.c.b16 %v1911, %v1907
        %v2136 = vpack.c.b16 %v1912, %v1908
        %v2137 = vpack.c.b16 %v1913, %v1909
        %v2138 = vpack.c.b16 %v1914, %v1910
        %v2139 = vpack.c.b16 %v1919, %v1915
        %v2140 = vpack.c.b16 %v1920, %v1916
        %v2141 = vpack.c.b16 %v1921, %v1917
        %v2142 = vpack.c.b16 %v1922, %v1918
        %v2143 = vpack.c.b16 %v1927, %v1923
        %v2144 = vpack.c.b16 %v1928, %v1924
        %v2145 = vpack.c.b16 %v1929, %v1925
        %v2146 = vpack.c.b16 %v1930, %v1926
        %v2147 = vpack.c.b16 %v1935, %v1931
        %v2148 = vpack.c.b16 %v1936, %v1932
        %v2149 = vpack.c.b16 %v1937, %v1933
        %v2150 = vpack.c.b16 %v1938, %v1934
        %v2151 = vpack.c.b16 %v1943, %v1939
        %v2152 = vpack.c.b16 %v1944, %v1940
        %v2153 = vpack.c.b16 %v1945, %v1941
        %v2154 = vpack.c.b16 %v1946, %v1942
        %v2155 = vpack.c.b16 %v1951, %v1947
        %v2156 = vpack.c.b16 %v1952, %v1948
        %v2157 = vpack.c.b16 %v1953, %v1949
        %v2158 = vpack.c.b16 %v1954, %v1950
        %v2159 = vpack.c.b16 %v1959, %v1955
        %v2160 = vpack.c.b16 %v1960, %v1956
        %v2161 = vpack.c.b16 %v1961, %v1957
        %v2162 = vpack.c.b16 %v1962, %v1958
        %v2163 = vpack.c.b16 %v1967, %v1963
        %v2164 = vpack.c.b16 %v1968, %v1964
        %v2165 = vpack.c.b16 %v1969, %v1965
        %v2166 = vpack.c.b16 %v1970, %v1966
        %v2167 = vpack.c.b16 %v1975, %v1971
        %v2168 = vpack.c.b16 %v1976, %v1972
        %v2169 = vpack.c.b16 %v1977, %v1973
        %v2170 = vpack.c.b16 %v1978, %v1974
        %v2171 = vpack.c.b16 %v1983, %v1979
        %v2172 = vpack.c.b16 %v1984, %v1980
        %v2173 = vpack.c.b16 %v1985, %v1981
        %v2174 = vpack.c.b16 %v1986, %v1982
        %v2175 = vpack.c.b16 %v1991, %v1987
        %v2176 = vpack.c.b16 %v1992, %v1988
        %v2177 = vpack.c.b16 %v1993, %v1989
        %v2178 = vpack.c.b16 %v1994, %v1990
        %v2179 = vpack.c.b16 %v1999, %v1995
        %v2180 = vpack.c.b16 %v2000, %v1996
        %v2181 = vpack.c.b16 %v2001, %v1997
        %v2182 = vpack.c.b16 %v2002, %v1998
        %v2183 = vpack.c.b16 %v2007, %v2003
        %v2184 = vpack.c.b16 %v2008, %v2004
        %v2185 = vpack.c.b16 %v2009, %v2005
        %v2186 = vpack.c.b16 %v2010, %v2006
        %v2187 = vpack.c.b16 %v2015, %v2011
        %v2188 = vpack.c.b16 %v2016, %v2012
        %v2189 = vpack.c.b16 %v2017, %v2013
        %v2190 = vpack.c.b16 %v2018, %v2014
        %v2191 = vpack.c.b16 %v2023, %v2019
        %v2192 = vpack.c.b16 %v2024, %v2020
        %v2193 = vpack.c.b16 %v2025, %v2021
        %v2194 = vpack.c.b16 %v2026, %v2022
        %v2195 = vpack.c.b16 %v2031, %v2027
        %v2196 = vpack.c.b16 %v2032, %v2028
        %v2197 = vpack.c.b16 %v2033, %v2029
        %v2198 = vpack.c.b16 %v2034, %v2030
        %v2199 = vpack.c.b16 %v2039, %v2035
        %v2200 = vpack.c.b16 %v2040, %v2036
        %v2201 = vpack.c.b16 %v2041, %v2037
        %v2202 = vpack.c.b16 %v2042, %v2038
        %v2203 = vpack.c.b16 %v2047, %v2043
        %v2204 = vpack.c.b16 %v2048, %v2044
        %v2205 = vpack.c.b16 %v2049, %v2045
        %v2206 = vpack.c.b16 %v2050, %v2046
        %v2207 = vpack.c.b16 %v2055, %v2051
        %v2208 = vpack.c.b16 %v2056, %v2052
        %v2209 = vpack.c.b16 %v2057, %v2053
        %v2210 = vpack.c.b16 %v2058, %v2054
        %v2211 = vpack.c.b16 %v2063, %v2059
        %v2212 = vpack.c.b16 %v2064, %v2060
        %v2213 = vpack.c.b16 %v2065, %v2061
        %v2214 = vpack.c.b16 %v2066, %v2062
        %v2215 = vpack.c.b16 %v2071, %v2067
        %v2216 = vpack.c.b16 %v2072, %v2068
        %v2217 = vpack.c.b16 %v2073, %v2069
        %v2218 = vpack.c.b16 %v2074, %v2070
        %v2219 = vpack.c.b16 %v2079, %v2075
        %v2220 = vpack.c.b16 %v2080, %v2076
        %v2221 = vpack.c.b16 %v2081, %v2077
        %v2222 = vpack.c.b16 %v2082, %v2078
        %v2223 = vpack.c.b16 %v2087, %v2083
        %v2224 = vpack.c.b16 %v2088, %v2084
        %v2225 = vpack.c.b16 %v2089, %v2085
        %v2226 = vpack.c.b16 %v2090, %v2086
        %v2227 = vpack.c.b16 %v2095, %v2091
        %v2228 = vpack.c.b16 %v2096, %v2092
        %v2229 = vpack.c.b16 %v2097, %v2093
        %v2230 = vpack.c.b16 %v2098, %v2094
        %v2231 = vpack.c.b16 %v2103, %v2099
        %v2232 = vpack.c.b16 %v2104, %v2100
        %v2233 = vpack.c.b16 %v2105, %v2101
        %v2234 = vpack.c.b16 %v2106, %v2102
        %2363 = vmatprep.subr.bf16.mxu0 %v2108
        %2364 = vmatpush1.bf16.msra.mxu0 %v2107
        %2365 = vmatprep.subr.bf16.mxu0 %v2112
        %2366 = vmatpush1.bf16.msra.mxu0 %v2111
        %2367 = vmatprep.subr.bf16.mxu0 %v2116
        %2368 = vmatpush1.bf16.msra.mxu0 %v2115
        %2369 = vmatprep.subr.bf16.mxu0 %v2120
        %2370 = vmatpush1.bf16.msra.mxu0 %v2119
        %2371 = vmatprep.subr.bf16.mxu0 %v2124
        %2372 = vmatpush1.bf16.msra.mxu0 %v2123
        %2373 = vmatprep.subr.bf16.mxu0 %v2128
        %2374 = vmatpush1.bf16.msra.mxu0 %v2127
        %2375 = vmatprep.subr.bf16.mxu0 %v2132
        %2376 = vmatpush1.bf16.msra.mxu0 %v2131
        %2377 = vmatprep.subr.bf16.mxu0 %v2136
        %2378 = vmatpush1.bf16.msra.mxu0 %v2135
        %2379 = vmatprep.subr.bf16.mxu0 %v2140
        %2380 = vmatpush1.bf16.msra.mxu0 %v2139
        %2381 = vmatprep.subr.bf16.mxu0 %v2144
        %2382 = vmatpush1.bf16.msra.mxu0 %v2143
        %2383 = vmatprep.subr.bf16.mxu0 %v2148
        %2384 = vmatpush1.bf16.msra.mxu0 %v2147
        %2385 = vmatprep.subr.bf16.mxu0 %v2152
        %2386 = vmatpush1.bf16.msra.mxu0 %v2151
        %2387 = vmatprep.subr.bf16.mxu0 %v2156
        %2388 = vmatpush1.bf16.msra.mxu0 %v2155
        %2389 = vmatprep.subr.bf16.mxu0 %v2160
        %2390 = vmatpush1.bf16.msra.mxu0 %v2159
        %2391 = vmatprep.subr.bf16.mxu0 %v2164
        %2392 = vmatpush1.bf16.msra.mxu0 %v2163
        %2393 = vmatprep.subr.bf16.mxu0 %v2168
        %2394 = vmatpush1.bf16.msra.mxu0 %v2167
        %2395 = vmatprep.mubr.bf16.mxu0 %v1570
        %2396 = vmatmul.mubr.bf16.gmra.mrb[0].mxu0 %v1569
        %v2397 = vpop.f32.mrb[0].mxu0
        %v2398 = vadd.f32 %v1706, %v2397
        %v2399 = vpop.f32.mrb[0].mxu0
        %v2400 = vadd.f32 %v1710, %v2399
        %v2401 = vpop.f32.mrb[0].mxu0
        %v2402 = vpop.f32.mrb[0].mxu0
        %2403 = vdwg.mxu0
        %2404 = vmatprep.subr.bf16.mxu0 %v2172
        %2405 = vmatpush1.bf16.msra.mxu0 %v2171
        %2406 = vmatprep.subr.bf16.mxu0 %v2176
        %2407 = vmatpush1.bf16.msra.mxu0 %v2175
        %2408 = vmatprep.subr.bf16.mxu0 %v2180
        %2409 = vmatpush1.bf16.msra.mxu0 %v2179
        %2410 = vmatprep.subr.bf16.mxu0 %v2184
        %2411 = vmatpush1.bf16.msra.mxu0 %v2183
        %2412 = vmatprep.subr.bf16.mxu0 %v2188
        %2413 = vmatpush1.bf16.msra.mxu0 %v2187
        %2414 = vmatprep.subr.bf16.mxu0 %v2192
        %2415 = vmatpush1.bf16.msra.mxu0 %v2191
        %2416 = vmatprep.subr.bf16.mxu0 %v2196
        %2417 = vmatpush1.bf16.msra.mxu0 %v2195
        %2418 = vmatprep.subr.bf16.mxu0 %v2200
        %2419 = vmatpush1.bf16.msra.mxu0 %v2199
        %2420 = vmatprep.subr.bf16.mxu0 %v2204
        %2421 = vmatpush1.bf16.msra.mxu0 %v2203
        %2422 = vmatprep.subr.bf16.mxu0 %v2208
        %2423 = vmatpush1.bf16.msra.mxu0 %v2207
        %2424 = vmatprep.subr.bf16.mxu0 %v2212
        %2425 = vmatpush1.bf16.msra.mxu0 %v2211
        %2426 = vmatprep.subr.bf16.mxu0 %v2216
        %2427 = vmatpush1.bf16.msra.mxu0 %v2215
        %2428 = vmatprep.subr.bf16.mxu0 %v2220
        %2429 = vmatpush1.bf16.msra.mxu0 %v2219
        %2430 = vmatprep.subr.bf16.mxu0 %v2224
        %2431 = vmatpush1.bf16.msra.mxu0 %v2223
        %2432 = vmatprep.subr.bf16.mxu0 %v2228
        %2433 = vmatpush1.bf16.msra.mxu0 %v2227
        %2434 = vmatprep.subr.bf16.mxu0 %v2232
        %2435 = vmatpush1.bf16.msra.mxu0 %v2231
        %2436 = vmatprep.mubr.bf16.mxu0 %v1572
        %2437 = vmatmul.mubr.bf16.gmra.mrb[0].mxu0 %v1571
        %v2438 = vpop.f32.mrb[0].mxu0
        %v2439 = vadd.f32 %v2398, %v2438
        %v2440 = vpop.f32.mrb[0].mxu0
        %v2441 = vadd.f32 %v2400, %v2440
        %v2442 = vpop.f32.mrb[0].mxu0
        %v2443 = vpop.f32.mrb[0].mxu0
        %2444 = vdwg.mxu0
        %2445 = vmatprep.subr.bf16.mxu0 %v2110
        %2446 = vmatpush1.bf16.msra.mxu0 %v2109
        %2447 = vmatprep.subr.bf16.mxu0 %v2114
        %2448 = vmatpush1.bf16.msra.mxu0 %v2113
        %2449 = vmatprep.subr.bf16.mxu0 %v2118
        %2450 = vmatpush1.bf16.msra.mxu0 %v2117
        %2451 = vmatprep.subr.bf16.mxu0 %v2122
        %2452 = vmatpush1.bf16.msra.mxu0 %v2121
        %2453 = vmatprep.subr.bf16.mxu0 %v2126
        %2454 = vmatpush1.bf16.msra.mxu0 %v2125
        %2455 = vmatprep.subr.bf16.mxu0 %v2130
        %2456 = vmatpush1.bf16.msra.mxu0 %v2129
        %2457 = vmatprep.subr.bf16.mxu0 %v2134
        %2458 = vmatpush1.bf16.msra.mxu0 %v2133
        %2459 = vmatprep.subr.bf16.mxu0 %v2138
        %2460 = vmatpush1.bf16.msra.mxu0 %v2137
        %2461 = vmatprep.subr.bf16.mxu0 %v2142
        %2462 = vmatpush1.bf16.msra.mxu0 %v2141
        %2463 = vmatprep.subr.bf16.mxu0 %v2146
        %2464 = vmatpush1.bf16.msra.mxu0 %v2145
        %2465 = vmatprep.subr.bf16.mxu0 %v2150
        %2466 = vmatpush1.bf16.msra.mxu0 %v2149
        %2467 = vmatprep.subr.bf16.mxu0 %v2154
        %2468 = vmatpush1.bf16.msra.mxu0 %v2153
        %2469 = vmatprep.subr.bf16.mxu0 %v2158
        %2470 = vmatpush1.bf16.msra.mxu0 %v2157
        %2471 = vmatprep.subr.bf16.mxu0 %v2162
        %2472 = vmatpush1.bf16.msra.mxu0 %v2161
        %2473 = vmatprep.subr.bf16.mxu0 %v2166
        %2474 = vmatpush1.bf16.msra.mxu0 %v2165
        %2475 = vmatprep.subr.bf16.mxu0 %v2170
        %2476 = vmatpush1.bf16.msra.mxu0 %v2169
        %2477 = vmatprep.mubr.bf16.mxu0 %v1570
        %2478 = vmatmul.mubr.bf16.gmra.mrb[0].mxu0 %v1569
        %v2479 = vpop.f32.mrb[0].mxu0
        %v2480 = vadd.f32 %v1714, %v2479
        %v2481 = vpop.f32.mrb[0].mxu0
        %v2482 = vadd.f32 %v1718, %v2481
        %v2483 = vpop.f32.mrb[0].mxu0
        %v2484 = vpop.f32.mrb[0].mxu0
        %2485 = vdwg.mxu0
        %2486 = vmatprep.subr.bf16.mxu0 %v2174
        %2487 = vmatpush1.bf16.msra.mxu0 %v2173
        %2488 = vmatprep.subr.bf16.mxu0 %v2178
        %2489 = vmatpush1.bf16.msra.mxu0 %v2177
        %2490 = vmatprep.subr.bf16.mxu0 %v2182
        %2491 = vmatpush1.bf16.msra.mxu0 %v2181
        %2492 = vmatprep.subr.bf16.mxu0 %v2186
        %2493 = vmatpush1.bf16.msra.mxu0 %v2185
        %2494 = vmatprep.subr.bf16.mxu0 %v2190
        %2495 = vmatpush1.bf16.msra.mxu0 %v2189
        %2496 = vmatprep.subr.bf16.mxu0 %v2194
        %2497 = vmatpush1.bf16.msra.mxu0 %v2193
        %2498 = vmatprep.subr.bf16.mxu0 %v2198
        %2499 = vmatpush1.bf16.msra.mxu0 %v2197
        %2500 = vmatprep.subr.bf16.mxu0 %v2202
        %2501 = vmatpush1.bf16.msra.mxu0 %v2201
        %2502 = vmatprep.subr.bf16.mxu0 %v2206
        %2503 = vmatpush1.bf16.msra.mxu0 %v2205
        %2504 = vmatprep.subr.bf16.mxu0 %v2210
        %2505 = vmatpush1.bf16.msra.mxu0 %v2209
        %2506 = vmatprep.subr.bf16.mxu0 %v2214
        %2507 = vmatpush1.bf16.msra.mxu0 %v2213
        %2508 = vmatprep.subr.bf16.mxu0 %v2218
        %2509 = vmatpush1.bf16.msra.mxu0 %v2217
        %2510 = vmatprep.subr.bf16.mxu0 %v2222
        %2511 = vmatpush1.bf16.msra.mxu0 %v2221
        %2512 = vmatprep.subr.bf16.mxu0 %v2226
        %2513 = vmatpush1.bf16.msra.mxu0 %v2225
        %2514 = vmatprep.subr.bf16.mxu0 %v2230
        %2515 = vmatpush1.bf16.msra.mxu0 %v2229
        %2516 = vmatprep.subr.bf16.mxu0 %v2234
        %2517 = vmatpush1.bf16.msra.mxu0 %v2233
        %2518 = vmatprep.mubr.bf16.mxu0 %v1572
        %2519 = vmatmul.mubr.bf16.gmra.mrb[0].mxu0 %v1571
        %v2520 = vpop.f32.mrb[0].mxu0
        %v2521 = vadd.f32 %v2480, %v2520
        %v2522 = vpop.f32.mrb[0].mxu0
        %v2523 = vadd.f32 %v2482, %v2522
        %v2524 = vpop.f32.mrb[0].mxu0
        %v2525 = vpop.f32.mrb[0].mxu0
        %2526 = vdwg.mxu0
        %v2527 = vmax.f32 %v2439, 0.0
        %v2528 = vmax.f32 %v2441, 0.0
        %v2529 = vmax.f32 %v2521, 0.0
        %v2530 = vmax.f32 %v2523, 0.0
        %v2531 = vpack.c.bf16 %v2527, %v2527
        %v2532 = vpack.c.bf16 %v2528, %v2528
        %v2533 = vpack.c.bf16 %v2529, %v2529
        %v2534 = vpack.c.bf16 %v2530, %v2530
        %v2535 = vld [vmem:[#allocation6] sm:$0xff]
        %v2536 = vld [vmem:[#allocation6 + $0x8] sm:$0xff]
        %v2537 = vld [vmem:[#allocation6 + $0x10] sm:$0xff]
        %v2538 = vld [vmem:[#allocation6 + $0x18] sm:$0xff]
        %v2539 = vld [vmem:[#allocation6 + $0x20] sm:$0xff]
        %v2540 = vld [vmem:[#allocation6 + $0x28] sm:$0xff]
        %v2541 = vld [vmem:[#allocation6 + $0x30] sm:$0xff]
        %v2542 = vld [vmem:[#allocation6 + $0x38] sm:$0xff]
        %v2543 = vld [vmem:[#allocation6 + $0x40] sm:$0xff]
        %v2544 = vld [vmem:[#allocation6 + $0x48] sm:$0xff]
        %v2545 = vld [vmem:[#allocation6 + $0x50] sm:$0xff]
        %v2546 = vld [vmem:[#allocation6 + $0x58] sm:$0xff]
        %v2547 = vld [vmem:[#allocation6 + $0x60] sm:$0xff]
        %v2548 = vld [vmem:[#allocation6 + $0x68] sm:$0xff]
        %v2549 = vld [vmem:[#allocation6 + $0x70] sm:$0xff]
        %v2550 = vld [vmem:[#allocation6 + $0x78] sm:$0xff]
        %v2551 = vld [vmem:[#allocation6 + $0x80] sm:$0xff]
        %v2552 = vld [vmem:[#allocation6 + $0x88] sm:$0xff]
        %v2553 = vld [vmem:[#allocation6 + $0x90] sm:$0xff]
        %v2554 = vld [vmem:[#allocation6 + $0x98] sm:$0xff]
        %v2555 = vld [vmem:[#allocation6 + $0xa0] sm:$0xff]
        %v2556 = vld [vmem:[#allocation6 + $0xa8] sm:$0xff]
        %v2557 = vld [vmem:[#allocation6 + $0xb0] sm:$0xff]
        %v2558 = vld [vmem:[#allocation6 + $0xb8] sm:$0xff]
        %v2559 = vld [vmem:[#allocation6 + $0xc0] sm:$0xff]
        %v2560 = vld [vmem:[#allocation6 + $0xc8] sm:$0xff]
        %v2561 = vld [vmem:[#allocation6 + $0xd0] sm:$0xff]
        %v2562 = vld [vmem:[#allocation6 + $0xd8] sm:$0xff]
        %v2563 = vld [vmem:[#allocation6 + $0xe0] sm:$0xff]
        %v2564 = vld [vmem:[#allocation6 + $0xe8] sm:$0xff]
        %v2565 = vld [vmem:[#allocation6 + $0xf0] sm:$0xff]
        %v2566 = vld [vmem:[#allocation6 + $0xf8] sm:$0xff]
        %v2567 = vld [vmem:[#allocation6 + $0x100] sm:$0xff]
        %v2568 = vld [vmem:[#allocation6 + $0x108] sm:$0xff]
        %v2569 = vld [vmem:[#allocation6 + $0x110] sm:$0xff]
        %v2570 = vld [vmem:[#allocation6 + $0x118] sm:$0xff]
        %v2571 = vld [vmem:[#allocation6 + $0x120] sm:$0xff]
        %v2572 = vld [vmem:[#allocation6 + $0x128] sm:$0xff]
        %v2573 = vld [vmem:[#allocation6 + $0x130] sm:$0xff]
        %v2574 = vld [vmem:[#allocation6 + $0x138] sm:$0xff]
        %v2575 = vld [vmem:[#allocation6 + $0x140] sm:$0xff]
        %v2576 = vld [vmem:[#allocation6 + $0x148] sm:$0xff]
        %v2577 = vld [vmem:[#allocation6 + $0x150] sm:$0xff]
        %v2578 = vld [vmem:[#allocation6 + $0x158] sm:$0xff]
        %v2579 = vld [vmem:[#allocation6 + $0x160] sm:$0xff]
        %v2580 = vld [vmem:[#allocation6 + $0x168] sm:$0xff]
        %v2581 = vld [vmem:[#allocation6 + $0x170] sm:$0xff]
        %v2582 = vld [vmem:[#allocation6 + $0x178] sm:$0xff]
        %v2583 = vld [vmem:[#allocation6 + $0x180] sm:$0xff]
        %v2584 = vld [vmem:[#allocation6 + $0x188] sm:$0xff]
        %v2585 = vld [vmem:[#allocation6 + $0x190] sm:$0xff]
        %v2586 = vld [vmem:[#allocation6 + $0x198] sm:$0xff]
        %v2587 = vld [vmem:[#allocation6 + $0x1a0] sm:$0xff]
        %v2588 = vld [vmem:[#allocation6 + $0x1a8] sm:$0xff]
        %v2589 = vld [vmem:[#allocation6 + $0x1b0] sm:$0xff]
        %v2590 = vld [vmem:[#allocation6 + $0x1b8] sm:$0xff]
        %v2591 = vld [vmem:[#allocation6 + $0x1c0] sm:$0xff]
        %v2592 = vld [vmem:[#allocation6 + $0x1c8] sm:$0xff]
        %v2593 = vld [vmem:[#allocation6 + $0x1d0] sm:$0xff]
        %v2594 = vld [vmem:[#allocation6 + $0x1d8] sm:$0xff]
        %v2595 = vld [vmem:[#allocation6 + $0x1e0] sm:$0xff]
        %v2596 = vld [vmem:[#allocation6 + $0x1e8] sm:$0xff]
        %v2597 = vld [vmem:[#allocation6 + $0x1f0] sm:$0xff]
        %v2598 = vld [vmem:[#allocation6 + $0x1f8] sm:$0xff]
        %v2599 = vld [vmem:[%s7] sm:$0x3]
        %v2601 = vlaneseq
        %v2602 = vshrl.u32 %v2601, 7
        %v2603 = vsub.s32 0, %v2602
        %v2604 = vrot.slane %v2599, %v2603
        %v2605 = vlaneseq
        %v2606 = vshrl.u32 %v2605, 7
        %v2607 = vsub.s32 1, %v2606
        %v2608 = vrot.slane %v2599, %v2607
        %v2675 = vunpack.c.l.b16 %v2535
        %v2676 = vunpack.c.h.b16 %v2535
        %v2677 = vunpack.c.l.b16 %v2536
        %v2678 = vunpack.c.h.b16 %v2536
        %v2679 = vunpack.c.l.b16 %v2537
        %v2680 = vunpack.c.h.b16 %v2537
        %v2681 = vunpack.c.l.b16 %v2538
        %v2682 = vunpack.c.h.b16 %v2538
        %v2683 = vunpack.c.l.b16 %v2539
        %v2684 = vunpack.c.h.b16 %v2539
        %v2685 = vunpack.c.l.b16 %v2540
        %v2686 = vunpack.c.h.b16 %v2540
        %v2687 = vunpack.c.l.b16 %v2541
        %v2688 = vunpack.c.h.b16 %v2541
        %v2689 = vunpack.c.l.b16 %v2542
        %v2690 = vunpack.c.h.b16 %v2542
        %v2691 = vunpack.c.l.b16 %v2543
        %v2692 = vunpack.c.h.b16 %v2543
        %v2693 = vunpack.c.l.b16 %v2544
        %v2694 = vunpack.c.h.b16 %v2544
        %v2695 = vunpack.c.l.b16 %v2545
        %v2696 = vunpack.c.h.b16 %v2545
        %v2697 = vunpack.c.l.b16 %v2546
        %v2698 = vunpack.c.h.b16 %v2546
        %v2699 = vunpack.c.l.b16 %v2547
        %v2700 = vunpack.c.h.b16 %v2547
        %v2701 = vunpack.c.l.b16 %v2548
        %v2702 = vunpack.c.h.b16 %v2548
        %v2703 = vunpack.c.l.b16 %v2549
        %v2704 = vunpack.c.h.b16 %v2549
        %v2705 = vunpack.c.l.b16 %v2550
        %v2706 = vunpack.c.h.b16 %v2550
        %v2707 = vunpack.c.l.b16 %v2551
        %v2708 = vunpack.c.h.b16 %v2551
        %v2709 = vunpack.c.l.b16 %v2552
        %v2710 = vunpack.c.h.b16 %v2552
        %v2711 = vunpack.c.l.b16 %v2553
        %v2712 = vunpack.c.h.b16 %v2553
        %v2713 = vunpack.c.l.b16 %v2554
        %v2714 = vunpack.c.h.b16 %v2554
        %v2715 = vunpack.c.l.b16 %v2555
        %v2716 = vunpack.c.h.b16 %v2555
        %v2717 = vunpack.c.l.b16 %v2556
        %v2718 = vunpack.c.h.b16 %v2556
        %v2719 = vunpack.c.l.b16 %v2557
        %v2720 = vunpack.c.h.b16 %v2557
        %v2721 = vunpack.c.l.b16 %v2558
        %v2722 = vunpack.c.h.b16 %v2558
        %v2723 = vunpack.c.l.b16 %v2559
        %v2724 = vunpack.c.h.b16 %v2559
        %v2725 = vunpack.c.l.b16 %v2560
        %v2726 = vunpack.c.h.b16 %v2560
        %v2727 = vunpack.c.l.b16 %v2561
        %v2728 = vunpack.c.h.b16 %v2561
        %v2729 = vunpack.c.l.b16 %v2562
        %v2730 = vunpack.c.h.b16 %v2562
        %v2731 = vunpack.c.l.b16 %v2563
        %v2732 = vunpack.c.h.b16 %v2563
        %v2733 = vunpack.c.l.b16 %v2564
        %v2734 = vunpack.c.h.b16 %v2564
        %v2735 = vunpack.c.l.b16 %v2565
        %v2736 = vunpack.c.h.b16 %v2565
        %v2737 = vunpack.c.l.b16 %v2566
        %v2738 = vunpack.c.h.b16 %v2566
        %v2739 = vunpack.c.l.b16 %v2567
        %v2740 = vunpack.c.h.b16 %v2567
        %v2741 = vunpack.c.l.b16 %v2568
        %v2742 = vunpack.c.h.b16 %v2568
        %v2743 = vunpack.c.l.b16 %v2569
        %v2744 = vunpack.c.h.b16 %v2569
        %v2745 = vunpack.c.l.b16 %v2570
        %v2746 = vunpack.c.h.b16 %v2570
        %v2747 = vunpack.c.l.b16 %v2571
        %v2748 = vunpack.c.h.b16 %v2571
        %v2749 = vunpack.c.l.b16 %v2572
        %v2750 = vunpack.c.h.b16 %v2572
        %v2751 = vunpack.c.l.b16 %v2573
        %v2752 = vunpack.c.h.b16 %v2573
        %v2753 = vunpack.c.l.b16 %v2574
        %v2754 = vunpack.c.h.b16 %v2574
        %v2755 = vunpack.c.l.b16 %v2575
        %v2756 = vunpack.c.h.b16 %v2575
        %v2757 = vunpack.c.l.b16 %v2576
        %v2758 = vunpack.c.h.b16 %v2576
        %v2759 = vunpack.c.l.b16 %v2577
        %v2760 = vunpack.c.h.b16 %v2577
        %v2761 = vunpack.c.l.b16 %v2578
        %v2762 = vunpack.c.h.b16 %v2578
        %v2763 = vunpack.c.l.b16 %v2579
        %v2764 = vunpack.c.h.b16 %v2579
        %v2765 = vunpack.c.l.b16 %v2580
        %v2766 = vunpack.c.h.b16 %v2580
        %v2767 = vunpack.c.l.b16 %v2581
        %v2768 = vunpack.c.h.b16 %v2581
        %v2769 = vunpack.c.l.b16 %v2582
        %v2770 = vunpack.c.h.b16 %v2582
        %v2771 = vunpack.c.l.b16 %v2583
        %v2772 = vunpack.c.h.b16 %v2583
        %v2773 = vunpack.c.l.b16 %v2584
        %v2774 = vunpack.c.h.b16 %v2584
        %v2775 = vunpack.c.l.b16 %v2585
        %v2776 = vunpack.c.h.b16 %v2585
        %v2777 = vunpack.c.l.b16 %v2586
        %v2778 = vunpack.c.h.b16 %v2586
        %v2779 = vunpack.c.l.b16 %v2587
        %v2780 = vunpack.c.h.b16 %v2587
        %v2781 = vunpack.c.l.b16 %v2588
        %v2782 = vunpack.c.h.b16 %v2588
        %v2783 = vunpack.c.l.b16 %v2589
        %v2784 = vunpack.c.h.b16 %v2589
        %v2785 = vunpack.c.l.b16 %v2590
        %v2786 = vunpack.c.h.b16 %v2590
        %v2787 = vunpack.c.l.b16 %v2591
        %v2788 = vunpack.c.h.b16 %v2591
        %v2789 = vunpack.c.l.b16 %v2592
        %v2790 = vunpack.c.h.b16 %v2592
        %v2791 = vunpack.c.l.b16 %v2593
        %v2792 = vunpack.c.h.b16 %v2593
        %v2793 = vunpack.c.l.b16 %v2594
        %v2794 = vunpack.c.h.b16 %v2594
        %v2795 = vunpack.c.l.b16 %v2595
        %v2796 = vunpack.c.h.b16 %v2595
        %v2797 = vunpack.c.l.b16 %v2596
        %v2798 = vunpack.c.h.b16 %v2596
        %v2799 = vunpack.c.l.b16 %v2597
        %v2800 = vunpack.c.h.b16 %v2597
        %v2801 = vunpack.c.l.b16 %v2598
        %v2802 = vunpack.c.h.b16 %v2598
        %v2803 = vpack.c.b16 %v2677, %v2675
        %v2804 = vpack.c.b16 %v2678, %v2676
        %v2805 = vpack.c.b16 %v2681, %v2679
        %v2806 = vpack.c.b16 %v2682, %v2680
        %v2807 = vpack.c.b16 %v2685, %v2683
        %v2808 = vpack.c.b16 %v2686, %v2684
        %v2809 = vpack.c.b16 %v2689, %v2687
        %v2810 = vpack.c.b16 %v2690, %v2688
        %v2811 = vpack.c.b16 %v2693, %v2691
        %v2812 = vpack.c.b16 %v2694, %v2692
        %v2813 = vpack.c.b16 %v2697, %v2695
        %v2814 = vpack.c.b16 %v2698, %v2696
        %v2815 = vpack.c.b16 %v2701, %v2699
        %v2816 = vpack.c.b16 %v2702, %v2700
        %v2817 = vpack.c.b16 %v2705, %v2703
        %v2818 = vpack.c.b16 %v2706, %v2704
        %v2819 = vpack.c.b16 %v2709, %v2707
        %v2820 = vpack.c.b16 %v2710, %v2708
        %v2821 = vpack.c.b16 %v2713, %v2711
        %v2822 = vpack.c.b16 %v2714, %v2712
        %v2823 = vpack.c.b16 %v2717, %v2715
        %v2824 = vpack.c.b16 %v2718, %v2716
        %v2825 = vpack.c.b16 %v2721, %v2719
        %v2826 = vpack.c.b16 %v2722, %v2720
        %v2827 = vpack.c.b16 %v2725, %v2723
        %v2828 = vpack.c.b16 %v2726, %v2724
        %v2829 = vpack.c.b16 %v2729, %v2727
        %v2830 = vpack.c.b16 %v2730, %v2728
        %v2831 = vpack.c.b16 %v2733, %v2731
        %v2832 = vpack.c.b16 %v2734, %v2732
        %v2833 = vpack.c.b16 %v2737, %v2735
        %v2834 = vpack.c.b16 %v2738, %v2736
        %v2835 = vpack.c.b16 %v2741, %v2739
        %v2836 = vpack.c.b16 %v2742, %v2740
        %v2837 = vpack.c.b16 %v2745, %v2743
        %v2838 = vpack.c.b16 %v2746, %v2744
        %v2839 = vpack.c.b16 %v2749, %v2747
        %v2840 = vpack.c.b16 %v2750, %v2748
        %v2841 = vpack.c.b16 %v2753, %v2751
        %v2842 = vpack.c.b16 %v2754, %v2752
        %v2843 = vpack.c.b16 %v2757, %v2755
        %v2844 = vpack.c.b16 %v2758, %v2756
        %v2845 = vpack.c.b16 %v2761, %v2759
        %v2846 = vpack.c.b16 %v2762, %v2760
        %v2847 = vpack.c.b16 %v2765, %v2763
        %v2848 = vpack.c.b16 %v2766, %v2764
        %v2849 = vpack.c.b16 %v2769, %v2767
        %v2850 = vpack.c.b16 %v2770, %v2768
        %v2851 = vpack.c.b16 %v2773, %v2771
        %v2852 = vpack.c.b16 %v2774, %v2772
        %v2853 = vpack.c.b16 %v2777, %v2775
        %v2854 = vpack.c.b16 %v2778, %v2776
        %v2855 = vpack.c.b16 %v2781, %v2779
        %v2856 = vpack.c.b16 %v2782, %v2780
        %v2857 = vpack.c.b16 %v2785, %v2783
        %v2858 = vpack.c.b16 %v2786, %v2784
        %v2859 = vpack.c.b16 %v2789, %v2787
        %v2860 = vpack.c.b16 %v2790, %v2788
        %v2861 = vpack.c.b16 %v2793, %v2791
        %v2862 = vpack.c.b16 %v2794, %v2792
        %v2863 = vpack.c.b16 %v2797, %v2795
        %v2864 = vpack.c.b16 %v2798, %v2796
        %v2865 = vpack.c.b16 %v2801, %v2799
        %v2866 = vpack.c.b16 %v2802, %v2800
        %2931 = vmatprep.subr.bf16.mxu0 %v2804
        %2932 = vmatpush1.bf16.msra.mxu0 %v2803
        %2933 = vmatprep.subr.bf16.mxu0 %v2806
        %2934 = vmatpush1.bf16.msra.mxu0 %v2805
        %2935 = vmatprep.subr.bf16.mxu0 %v2808
        %2936 = vmatpush1.bf16.msra.mxu0 %v2807
        %2937 = vmatprep.subr.bf16.mxu0 %v2810
        %2938 = vmatpush1.bf16.msra.mxu0 %v2809
        %2939 = vmatprep.subr.bf16.mxu0 %v2812
        %2940 = vmatpush1.bf16.msra.mxu0 %v2811
        %2941 = vmatprep.subr.bf16.mxu0 %v2814
        %2942 = vmatpush1.bf16.msra.mxu0 %v2813
        %2943 = vmatprep.subr.bf16.mxu0 %v2816
        %2944 = vmatpush1.bf16.msra.mxu0 %v2815
        %2945 = vmatprep.subr.bf16.mxu0 %v2818
        %2946 = vmatpush1.bf16.msra.mxu0 %v2817
        %2947 = vmatprep.subr.bf16.mxu0 %v2820
        %2948 = vmatpush1.bf16.msra.mxu0 %v2819
        %2949 = vmatprep.subr.bf16.mxu0 %v2822
        %2950 = vmatpush1.bf16.msra.mxu0 %v2821
        %2951 = vmatprep.subr.bf16.mxu0 %v2824
        %2952 = vmatpush1.bf16.msra.mxu0 %v2823
        %2953 = vmatprep.subr.bf16.mxu0 %v2826
        %2954 = vmatpush1.bf16.msra.mxu0 %v2825
        %2955 = vmatprep.subr.bf16.mxu0 %v2828
        %2956 = vmatpush1.bf16.msra.mxu0 %v2827
        %2957 = vmatprep.subr.bf16.mxu0 %v2830
        %2958 = vmatpush1.bf16.msra.mxu0 %v2829
        %2959 = vmatprep.subr.bf16.mxu0 %v2832
        %2960 = vmatpush1.bf16.msra.mxu0 %v2831
        %2961 = vmatprep.subr.bf16.mxu0 %v2834
        %2962 = vmatpush1.bf16.msra.mxu0 %v2833
        %2963 = vmatprep.mubr.bf16.mxu0 %v2532
        %2964 = vmatmul.mubr.bf16.gmra.mrb[0].mxu0 %v2531
        %v2965 = vpop.f32.mrb[0].mxu0
        %v2966 = vadd.f32 %v2604, %v2965
        %v2967 = vpop.f32.mrb[0].mxu0
        %v2968 = vadd.f32 %v2608, %v2967
        %v2969 = vpop.f32.mrb[0].mxu0
        %v2970 = vpop.f32.mrb[0].mxu0
        %2971 = vdwg.mxu0
        %2972 = vmatprep.subr.bf16.mxu0 %v2836
        %2973 = vmatpush1.bf16.msra.mxu0 %v2835
        %2974 = vmatprep.subr.bf16.mxu0 %v2838
        %2975 = vmatpush1.bf16.msra.mxu0 %v2837
        %2976 = vmatprep.subr.bf16.mxu0 %v2840
        %2977 = vmatpush1.bf16.msra.mxu0 %v2839
        %2978 = vmatprep.subr.bf16.mxu0 %v2842
        %2979 = vmatpush1.bf16.msra.mxu0 %v2841
        %2980 = vmatprep.subr.bf16.mxu0 %v2844
        %2981 = vmatpush1.bf16.msra.mxu0 %v2843
        %2982 = vmatprep.subr.bf16.mxu0 %v2846
        %2983 = vmatpush1.bf16.msra.mxu0 %v2845
        %2984 = vmatprep.subr.bf16.mxu0 %v2848
        %2985 = vmatpush1.bf16.msra.mxu0 %v2847
        %2986 = vmatprep.subr.bf16.mxu0 %v2850
        %2987 = vmatpush1.bf16.msra.mxu0 %v2849
        %2988 = vmatprep.subr.bf16.mxu0 %v2852
        %2989 = vmatpush1.bf16.msra.mxu0 %v2851
        %2990 = vmatprep.subr.bf16.mxu0 %v2854
        %2991 = vmatpush1.bf16.msra.mxu0 %v2853
        %2992 = vmatprep.subr.bf16.mxu0 %v2856
        %2993 = vmatpush1.bf16.msra.mxu0 %v2855
        %2994 = vmatprep.subr.bf16.mxu0 %v2858
        %2995 = vmatpush1.bf16.msra.mxu0 %v2857
        %2996 = vmatprep.subr.bf16.mxu0 %v2860
        %2997 = vmatpush1.bf16.msra.mxu0 %v2859
        %2998 = vmatprep.subr.bf16.mxu0 %v2862
        %2999 = vmatpush1.bf16.msra.mxu0 %v2861
        %3000 = vmatprep.subr.bf16.mxu0 %v2864
        %3001 = vmatpush1.bf16.msra.mxu0 %v2863
        %3002 = vmatprep.subr.bf16.mxu0 %v2866
        %3003 = vmatpush1.bf16.msra.mxu0 %v2865
        %3004 = vmatprep.mubr.bf16.mxu0 %v2534
        %3005 = vmatmul.mubr.bf16.gmra.mrb[0].mxu0 %v2533
        %v3006 = vpop.f32.mrb[0].mxu0
        %v3007 = vadd.f32 %v2966, %v3006
        %v3008 = vpop.f32.mrb[0].mxu0
        %v3009 = vadd.f32 %v2968, %v3008
        %v3010 = vpop.f32.mrb[0].mxu0
        %v3011 = vpop.f32.mrb[0].mxu0
        %3012 = vdwg.mxu0
        %v3013 = vmax.f32 %v3007, 0.0
        %v3014 = vmax.f32 %v3009, 0.0
        %v3015 = vpack.c.bf16 %v3013, %v3013
        %v3016 = vpack.c.bf16 %v3014, %v3014
        %v3017 = vld [vmem:[%s8] sm:$0xf]
        %v3018 = vld [vmem:[%s8 + $0x4] sm:$0xf]
        %v3019 = vld [vmem:[%s8 + $0x8] sm:$0xf]
        %v3020 = vld [vmem:[%s8 + $0xc] sm:$0xf]
        %v3021 = vld [vmem:[%s8 + $0x10] sm:$0xf]
        %v3022 = vld [vmem:[%s8 + $0x14] sm:$0xf]
        %v3023 = vld [vmem:[%s8 + $0x18] sm:$0xf]
        %v3024 = vld [vmem:[%s8 + $0x1c] sm:$0xf]
        %v3025 = vld [vmem:[%s8 + $0x20] sm:$0xf]
        %v3026 = vld [vmem:[%s8 + $0x24] sm:$0xf]
        %v3027 = vld [vmem:[%s8 + $0x28] sm:$0xf]
        %v3028 = vld [vmem:[%s8 + $0x2c] sm:$0xf]
        %v3029 = vld [vmem:[%s8 + $0x30] sm:$0xf]
        %v3030 = vld [vmem:[%s8 + $0x34] sm:$0xf]
        %v3031 = vld [vmem:[%s8 + $0x38] sm:$0xf]
        %v3032 = vld [vmem:[%s8 + $0x3c] sm:$0xf]
        %v3033 = vld [vmem:[%s8 + $0x40] sm:$0xf]
        %v3034 = vld [vmem:[%s8 + $0x44] sm:$0xf]
        %v3035 = vld [vmem:[%s8 + $0x48] sm:$0xf]
        %v3036 = vld [vmem:[%s8 + $0x4c] sm:$0xf]
        %v3037 = vld [vmem:[%s8 + $0x50] sm:$0xf]
        %v3038 = vld [vmem:[%s8 + $0x54] sm:$0xf]
        %v3039 = vld [vmem:[%s8 + $0x58] sm:$0xf]
        %v3040 = vld [vmem:[%s8 + $0x5c] sm:$0xf]
        %v3041 = vld [vmem:[%s8 + $0x60] sm:$0xf]
        %v3042 = vld [vmem:[%s8 + $0x64] sm:$0xf]
        %v3043 = vld [vmem:[%s8 + $0x68] sm:$0xf]
        %v3044 = vld [vmem:[%s8 + $0x6c] sm:$0xf]
        %v3045 = vld [vmem:[%s8 + $0x70] sm:$0xf]
        %v3046 = vld [vmem:[%s8 + $0x74] sm:$0xf]
        %v3047 = vld [vmem:[%s8 + $0x78] sm:$0xf]
        %v3048 = vld [vmem:[%s8 + $0x7c] sm:$0xf]
        %v3049 = vld [vmem:[%s9] sm:$0x1]
        %v3051 = vlaneseq
        %v3052 = vshrl.u32 %v3051, 7
        %v3053 = vsub.s32 0, %v3052
        %v3054 = vrot.slane %v3049, %v3053
        %v3088 = vunpack.c.l.b16 %v3017
        %v3089 = vunpack.c.l.b16 %v3018
        %v3090 = vunpack.c.l.b16 %v3019
        %v3091 = vunpack.c.l.b16 %v3020
        %v3092 = vunpack.c.l.b16 %v3021
        %v3093 = vunpack.c.l.b16 %v3022
        %v3094 = vunpack.c.l.b16 %v3023
        %v3095 = vunpack.c.l.b16 %v3024
        %v3096 = vunpack.c.l.b16 %v3025
        %v3097 = vunpack.c.l.b16 %v3026
        %v3098 = vunpack.c.l.b16 %v3027
        %v3099 = vunpack.c.l.b16 %v3028
        %v3100 = vunpack.c.l.b16 %v3029
        %v3101 = vunpack.c.l.b16 %v3030
        %v3102 = vunpack.c.l.b16 %v3031
        %v3103 = vunpack.c.l.b16 %v3032
        %v3104 = vunpack.c.l.b16 %v3033
        %v3105 = vunpack.c.l.b16 %v3034
        %v3106 = vunpack.c.l.b16 %v3035
        %v3107 = vunpack.c.l.b16 %v3036
        %v3108 = vunpack.c.l.b16 %v3037
        %v3109 = vunpack.c.l.b16 %v3038
        %v3110 = vunpack.c.l.b16 %v3039
        %v3111 = vunpack.c.l.b16 %v3040
        %v3112 = vunpack.c.l.b16 %v3041
        %v3113 = vunpack.c.l.b16 %v3042
        %v3114 = vunpack.c.l.b16 %v3043
        %v3115 = vunpack.c.l.b16 %v3044
        %v3116 = vunpack.c.l.b16 %v3045
        %v3117 = vunpack.c.l.b16 %v3046
        %v3118 = vunpack.c.l.b16 %v3047
        %v3119 = vunpack.c.l.b16 %v3048
        %v3120 = vpack.c.b16 %v3089, %v3088
        %v3121 = vpack.c.b16 %v3091, %v3090
        %v3122 = vpack.c.b16 %v3093, %v3092
        %v3123 = vpack.c.b16 %v3095, %v3094
        %v3124 = vpack.c.b16 %v3097, %v3096
        %v3125 = vpack.c.b16 %v3099, %v3098
        %v3126 = vpack.c.b16 %v3101, %v3100
        %v3127 = vpack.c.b16 %v3103, %v3102
        %v3128 = vpack.c.b16 %v3105, %v3104
        %v3129 = vpack.c.b16 %v3107, %v3106
        %v3130 = vpack.c.b16 %v3109, %v3108
        %v3131 = vpack.c.b16 %v3111, %v3110
        %v3132 = vpack.c.b16 %v3113, %v3112
        %v3133 = vpack.c.b16 %v3115, %v3114
        %v3134 = vpack.c.b16 %v3117, %v3116
        %v3135 = vpack.c.b16 %v3119, %v3118
        %3152 = vmatprep.subr.bf16.mxu0 0
        %3153 = vmatpush1.bf16.msra.mxu0 %v3120
        %3154 = vmatprep.subr.bf16.mxu0 0
        %3155 = vmatpush1.bf16.msra.mxu0 %v3121
        %3156 = vmatprep.subr.bf16.mxu0 0
        %3157 = vmatpush1.bf16.msra.mxu0 %v3122
        %3158 = vmatprep.subr.bf16.mxu0 0
        %3159 = vmatpush1.bf16.msra.mxu0 %v3123
        %3160 = vmatprep.subr.bf16.mxu0 0
        %3161 = vmatpush1.bf16.msra.mxu0 %v3124
        %3162 = vmatprep.subr.bf16.mxu0 0
        %3163 = vmatpush1.bf16.msra.mxu0 %v3125
        %3164 = vmatprep.subr.bf16.mxu0 0
        %3165 = vmatpush1.bf16.msra.mxu0 %v3126
        %3166 = vmatprep.subr.bf16.mxu0 0
        %3167 = vmatpush1.bf16.msra.mxu0 %v3127
        %3168 = vmatprep.subr.bf16.mxu0 0
        %3169 = vmatpush1.bf16.msra.mxu0 %v3128
        %3170 = vmatprep.subr.bf16.mxu0 0
        %3171 = vmatpush1.bf16.msra.mxu0 %v3129
        %3172 = vmatprep.subr.bf16.mxu0 0
        %3173 = vmatpush1.bf16.msra.mxu0 %v3130
        %3174 = vmatprep.subr.bf16.mxu0 0
        %3175 = vmatpush1.bf16.msra.mxu0 %v3131
        %3176 = vmatprep.subr.bf16.mxu0 0
        %3177 = vmatpush1.bf16.msra.mxu0 %v3132
        %3178 = vmatprep.subr.bf16.mxu0 0
        %3179 = vmatpush1.bf16.msra.mxu0 %v3133
        %3180 = vmatprep.subr.bf16.mxu0 0
        %3181 = vmatpush1.bf16.msra.mxu0 %v3134
        %3182 = vmatprep.subr.bf16.mxu0 0
        %3183 = vmatpush1.bf16.msra.mxu0 %v3135
        %3184 = vmatprep.mubr.bf16.mxu0 %v3016
        %3185 = vmatmul.mubr.bf16.gmra.mrb[0].mxu0 %v3015
        %v3186 = vpop.f32.mrb[0].mxu0
        %v3187 = vadd.f32 %v3054, %v3186
        %v3188 = vpop.f32.mrb[0].mxu0
        %v3189 = vpop.f32.mrb[0].mxu0
        %v3190 = vpop.f32.mrb[0].mxu0
        %3191 = vdwg.mxu0
        %vm3192 = vcmask 15360
        %3193 = vst.msk [vmem:[%s421] sm:$0xff] %vm3192, %v3187
        %p3194 = scmp.lt.s32.totalorder %s23, 1
        %s3195 = scalar_select %p3194, %s23, 1
        %s3196 = smul.addr %s3195, 8
        %s3197 = scalar_lea.vmem %s10, %s3196
        // Predicated region
        $region73: #{tpu_custom_call.1} parent=59 // pred_check
          %p3198 = pneg %p261
        $region74: #{tpu_custom_call.1} parent=59 // pred_check_branch
          %3200 = sbr.rel (%p3198) target = $region76
        $region75: #{tpu_custom_call.1} parent=59 // pred_region
          _
        $region76: #{tpu_custom_call.1} parent=59 // pred_fallthru
          _
      $region60: #{tpu_custom_call.1} parent=5 // pred_fallthru
        _
      %p3201 = scmp.le.s32.totalorder 2, %s18
      // Predicated region
      $region77: #{tpu_custom_call.1} parent=5 // pred_check
        %p3202 = pneg %p3201
      $region78: #{tpu_custom_call.1} parent=5 // pred_check_branch
        %3204 = sbr.rel (%p3202) target = $region80
      $region79: #{tpu_custom_call.1} parent=5 // pred_region
        %s3205 = ssub.s32 %s18, 2
        // Predicated region
        $region81: #{tpu_custom_call.1} parent=79 // pred_check
          %p3206 = pneg %p267
        $region82: #{tpu_custom_call.1} parent=79 // pred_check_branch
          %3208 = sbr.rel (%p3206) target = $region84
        $region83: #{tpu_custom_call.1} parent=79 // pred_region
          %p3209 = scmp.lt.s32.totalorder %s24, 1
          %s3210 = scalar_select %p3209, %s24, 1
          %s3211 = smul.addr %s3210, 8
          %s3212 = scalar_lea.vmem %s10, %s3211
        $region84: #{tpu_custom_call.1} parent=79 // pred_fallthru
          _
      $region80: #{tpu_custom_call.1} parent=5 // pred_fallthru
        _
    $region6: #{tpu_custom_call.1} parent=1 // loop_footer
      %s22 = sadd.s32 1, %s18
    $region7: #{tpu_custom_call.1} parent=1 // loop_footer_branch
      %17 = sbr.rel target = $region3
    $region8: #{tpu_custom_call.1} parent=1 // loop_exit
      _
    %3213 = vsyncpa [#allocation3], 1
    %s3214 = scalar_lea.sflag [#allocation3], 1
    %3215 = vsyncpa %s3214, 1
    %3216 = vsyncpa [#allocation5], 1

</llo_original>
